<compile_context>
chip_gen: v6e
topology: v6e:2x2x1
jax: 0.10.0
libtpu: 0.0.40
codegen_flags: <defaults>
</compile_context>

<pallas_src>
import functools

import jax
import jax.numpy as jnp
from jax.experimental import pallas as pl
from jax.experimental.pallas import tpu as pltpu

BN_EPS = 1e-5


# ----------------------------------------------------------------------------
# Pallas kernel: fused matmul + (scale) + bias + (residual) + (ReLU)
# ----------------------------------------------------------------------------
def _make_matmul_kernel(has_scale, has_residual, apply_relu):
    def kernel(*refs):
        idx = 0
        x_ref = refs[idx]; idx += 1
        w_ref = refs[idx]; idx += 1
        s_ref = None
        if has_scale:
            s_ref = refs[idx]; idx += 1
        b_ref = refs[idx]; idx += 1
        r_ref = None
        if has_residual:
            r_ref = refs[idx]; idx += 1
        o_ref = refs[idx]

        acc = jnp.dot(x_ref[...], w_ref[...],
                      preferred_element_type=jnp.float32)
        if has_scale:
            acc = acc * s_ref[...]
        acc = acc + b_ref[...]
        if has_residual:
            acc = acc + r_ref[...]
        if apply_relu:
            acc = jnp.maximum(acc, 0.0)
        o_ref[...] = acc.astype(o_ref.dtype)

    return kernel


def fused_matmul(x, w, bias, scale=None, residual=None, apply_relu=False):
    """out = maybe_relu((x @ w) [* scale] + bias [+ residual]).

    x: (M, K), w: (K, N), bias/scale: (N,), residual: (M, N).
    x and w are cast to bf16 (f32 accumulate); epilogue and output are f32.
    """
    M, K = x.shape
    Kw, N = w.shape
    assert K == Kw

    x = x.astype(jnp.bfloat16)
    w = w.astype(jnp.bfloat16)

    # Largest of {512, 256, 128} dividing M; otherwise one full-extent tile.
    tm = M
    for cand in (512, 256, 128):
        if M % cand == 0:
            tm = cand
            break
    grid = (M // tm,)

    in_specs = [
        pl.BlockSpec((tm, K), lambda i: (i, 0)),
        pl.BlockSpec((K, N), lambda i: (0, 0)),
    ]
    args = [x, w]
    if scale is not None:
        in_specs.append(pl.BlockSpec((1, N), lambda i: (0, 0)))
        args.append(scale.reshape(1, N).astype(jnp.float32))
    in_specs.append(pl.BlockSpec((1, N), lambda i: (0, 0)))
    args.append(bias.reshape(1, N).astype(jnp.float32))
    if residual is not None:
        in_specs.append(pl.BlockSpec((tm, N), lambda i: (i, 0)))
        args.append(residual.astype(jnp.float32))

    kernel = _make_matmul_kernel(scale is not None, residual is not None,
                                 apply_relu)
    return pl.pallas_call(
        kernel,
        out_shape=jax.ShapeDtypeStruct((M, N), jnp.float32),
        grid=grid,
        in_specs=in_specs,
        out_specs=pl.BlockSpec((tm, N), lambda i: (i, 0)),
        compiler_params=pltpu.CompilerParams(
            dimension_semantics=("parallel",)),
    )(*args)


# ----------------------------------------------------------------------------
# Glue: im2col, deformable bilinear sampling, weight/BN folding
# ----------------------------------------------------------------------------
def wmat_3x3(w):
    """(cout, cin, 3, 3) -> (9*cin, cout); row index = (kh*3+kw)*cin + c."""
    cout, cin = w.shape[0], w.shape[1]
    return jnp.transpose(w, (2, 3, 1, 0)).reshape(9 * cin, cout)


def fold_bn(bn):
    scale = bn["gamma"] / jnp.sqrt(bn["var"] + BN_EPS)
    bias = bn["beta"] - scale * bn["mean"]
    return scale, bias


def im2col_3x3(x, stride):
    """x: (N, H, W, C) NHWC, 3x3 kernel, pad=1 -> (N*Ho*Wo, 9*C)."""
    xp = jnp.pad(x, ((0, 0), (1, 1), (1, 1), (0, 0)))
    n, hp, wp, c = xp.shape
    ho = (hp - 3) // stride + 1
    wo = (wp - 3) // stride + 1
    cols = []
    for dy in range(3):
        for dx in range(3):
            cols.append(xp[:, dy:dy + stride * (ho - 1) + 1:stride,
                           dx:dx + stride * (wo - 1) + 1:stride, :])
    patches = jnp.concatenate(cols, axis=-1)  # (n, ho, wo, 9*c)
    return patches.reshape(n * ho * wo, 9 * c), (n, ho, wo)


def deform_sample(x, offsets, stride):
    """Offset-driven bilinear sampling (DeformConv2d v1 semantics).

    x: (b, H, W, C) NHWC; offsets: (b, h, w, 18) with the first 9 channels
    row offsets and the last 9 column offsets (torch channel order).
    Returns patches (b*h*w, 9*C) laid out as [n*C + c] to match wmat_3x3.
    """
    b, H, W, C = x.shape
    _, h, w, _ = offsets.shape
    N = 9
    xp = jnp.pad(x, ((0, 0), (1, 1), (1, 1), (0, 0)))
    Hp, Wp = H + 2, W + 2

    # sampling positions p = p_0 + p_n + offset (in padded coordinates)
    p0_r = 1.0 + stride * jnp.arange(h, dtype=jnp.float32)      # (h,)
    p0_c = 1.0 + stride * jnp.arange(w, dtype=jnp.float32)      # (w,)
    pn_r = (jnp.arange(N) // 3).astype(jnp.float32) - 1.0       # (9,)
    pn_c = (jnp.arange(N) % 3).astype(jnp.float32) - 1.0        # (9,)

    p_r = (p0_r[None, :, None, None] + pn_r[None, None, None, :]
           + offsets[..., :N])                                   # (b,h,w,9)
    p_c = (p0_c[None, None, :, None] + pn_c[None, None, None, :]
           + offsets[..., N:])

    q_lt_r = jnp.clip(jnp.floor(p_r), 0, Hp - 1)
    q_lt_c = jnp.clip(jnp.floor(p_c), 0, Wp - 1)
    q_rb_r = jnp.clip(jnp.floor(p_r) + 1, 0, Hp - 1)
    q_rb_c = jnp.clip(jnp.floor(p_c) + 1, 0, Wp - 1)

    p_r = jnp.clip(p_r, 0, Hp - 1)
    p_c = jnp.clip(p_c, 0, Wp - 1)

    g_lt = (1 + (q_lt_r - p_r)) * (1 + (q_lt_c - p_c))
    g_rb = (1 - (q_rb_r - p_r)) * (1 - (q_rb_c - p_c))
    g_lb = (1 + (q_lt_r - p_r)) * (1 - (q_rb_c - p_c))
    g_rt = (1 - (q_rb_r - p_r)) * (1 + (q_lt_c - p_c))

    xp_flat = xp.reshape(b, Hp * Wp, C)

    def gather(qr, qc):
        idx = (qr * Wp + qc).astype(jnp.int32).reshape(b, h * w * N, 1)
        return jnp.take_along_axis(xp_flat, idx, axis=1)  # (b, h*w*9, C)

    x_lt = gather(q_lt_r, q_lt_c)
    x_rb = gather(q_rb_r, q_rb_c)
    x_lb = gather(q_lt_r, q_rb_c)
    x_rt = gather(q_rb_r, q_lt_c)

    def gw(t):
        return t.reshape(b, h * w * N, 1)

    x_off = (gw(g_lt) * x_lt + gw(g_rb) * x_rb
             + gw(g_lb) * x_lb + gw(g_rt) * x_rt)     # (b, h*w*9, C)
    return x_off.reshape(b * h * w, N * C), (b, h, w)


# ----------------------------------------------------------------------------
# DeformConv2d + BatchNorm (inference) + optional residual / ReLU
# ----------------------------------------------------------------------------
def deform_conv_bn(x, dc, bn, stride, apply_relu, residual=None):
    """DeformConv2d(cin,cout,3,stride,1,bias=None) + BN, fused epilogue."""
    cout = dc["w"].shape[0]
    # p_conv: plain 3x3 conv (stride, pad=1) with bias -> 18 offset channels
    patches, (b, h, w) = im2col_3x3(x, stride)
    offsets = fused_matmul(patches, wmat_3x3(dc["p_w"]), dc["p_b"])
    offsets = offsets.reshape(b, h, w, 18)
    # deformable bilinear sampling -> (b*h*w, 9*cin) patches
    dpatches, _ = deform_sample(x, offsets, stride)
    # main conv + BN (+ residual) (+ ReLU), one fused Pallas matmul
    scale, bias = fold_bn(bn)
    out = fused_matmul(dpatches, wmat_3x3(dc["w"]), bias, scale=scale,
                       residual=residual, apply_relu=apply_relu)
    return out.reshape(b, h, w, cout)


def deform_block_forward(params, x_nchw, stride):
    """Deform_Block.forward: ReLU(conv_path(x) + short(x)). x: NCHW."""
    x = jnp.transpose(x_nchw, (0, 2, 3, 1)).astype(jnp.float32)  # -> NHWC
    cout = params["dc1"]["w"].shape[0]

    if "short_dc" in params:       # projection shortcut (cin!=cout or stride!=1)
        short = deform_conv_bn(x, params["short_dc"], params["short_bn"],
                               stride, apply_relu=False)
    else:                          # identity shortcut
        short = x
    res = short.reshape(-1, cout)

    h1 = deform_conv_bn(x, params["dc1"], params["bn1"], stride,
                        apply_relu=True)
    # second DeformConv2d + BN, fused with residual add and the final ReLU
    out = deform_conv_bn(h1, params["dc2"], params["bn2"], 1,
                         apply_relu=True, residual=res)
    return jnp.transpose(out, (0, 3, 1, 2))  # back to NCHW


# ----------------------------------------------------------------------------
# Deterministic parameter initialization (synthetic, no checkpoint)
# ----------------------------------------------------------------------------
def init_deform_conv(key, cin, cout):
    k1, k2, k3 = jax.random.split(key, 3)
    w = jax.random.normal(k1, (cout, cin, 3, 3), jnp.float32) * jnp.sqrt(
        2.0 / (cin * 9))
    # NOTE: torch zero-inits p_conv.weight; we use small random values so the
    # deformable sampling path is exercised with spatially varying offsets.
    p_w = 0.05 * jax.random.normal(k2, (18, cin, 3, 3), jnp.float32)
    p_b = 0.1 * jax.random.normal(k3, (18,), jnp.float32)
    return {"w": w, "p_w": p_w, "p_b": p_b}


def init_bn(key, c):
    k1, k2 = jax.random.split(key)
    return {
        "gamma": 1.0 + 0.1 * jax.random.normal(k1, (c,), jnp.float32),
        "beta": 0.1 * jax.random.normal(k2, (c,), jnp.float32),
        "mean": jnp.zeros((c,), jnp.float32),   # running stats as at init
        "var": jnp.ones((c,), jnp.float32),
    }


def init_deform_block(key, cin, cout, stride):
    keys = jax.random.split(key, 6)
    params = {
        "dc1": init_deform_conv(keys[0], cin, cout),
        "bn1": init_bn(keys[1], cout),
        "dc2": init_deform_conv(keys[2], cout, cout),
        "bn2": init_bn(keys[3], cout),
    }
    if cin != cout or stride != 1:
        params["short_dc"] = init_deform_conv(keys[4], cin, cout)
        params["short_bn"] = init_bn(keys[5], cout)
    return params


# ----------------------------------------------------------------------------
if __name__ == "__main__":
    # Deform_Block(inchannel=4, outchannel=16, stride=2, df=False)
    inchannel, outchannel, stride = 4, 16, 2
    batch, H, W = 2, 16, 16

    key = jax.random.PRNGKey(0)
    kp, kx = jax.random.split(key)
    params = init_deform_block(kp, inchannel, outchannel, stride)
    x = jax.random.normal(kx, (batch, inchannel, H, W), jnp.float32)

    fwd = jax.jit(functools.partial(deform_block_forward, stride=stride))
    out = jax.block_until_ready(fwd(params, x))

    assert out.shape == (batch, outchannel, H // stride, W // stride), out.shape
    assert bool(jnp.all(jnp.isfinite(out)))
    assert bool(jnp.all(out >= 0.0))  # final ReLU
    print("KERNEL_OK")
</pallas_src>

<mosaic_0001>
module attributes {stable_mosaic.version = 11 : i64} {
  func.func @kernel(%arg0: i32, %arg1: memref<128x36xbf16, #tpu.memory_space<vmem>>, %arg2: memref<36x18xbf16, #tpu.memory_space<vmem>>, %arg3: memref<1x18xf32, #tpu.memory_space<vmem>>, %arg4: memref<128x18xf32, #tpu.memory_space<vmem>>) attributes {dimension_semantics = [#tpu.dimension_semantics<parallel>], iteration_bounds = array<i64: 1>, scalar_prefetch = 0 : i64, scratch_operands = 0 : i64, tpu.core_type = #tpu.core_type<tc>, window_params = [{transform_indices = @transform_0, window_bounds = array<i64: 128, 36>}, {pipeline_mode = #tpu.pipeline_mode<synchronous>, transform_indices = @transform_1, window_bounds = array<i64: 36, 18>}, {pipeline_mode = #tpu.pipeline_mode<synchronous>, transform_indices = @transform_2, window_bounds = array<i64: 1, 18>}, {transform_indices = @transform_3, window_bounds = array<i64: 128, 18>}]} {
    %c0 = arith.constant 0 : index
    %c0_0 = arith.constant 0 : index
    %0 = vector.load %arg1[%c0, %c0_0] : memref<128x36xbf16, #tpu.memory_space<vmem>>, vector<128x36xbf16>
    %c0_1 = arith.constant 0 : index
    %c0_2 = arith.constant 0 : index
    %1 = vector.load %arg2[%c0_1, %c0_2] : memref<36x18xbf16, #tpu.memory_space<vmem>>, vector<36x18xbf16>
    %cst = arith.constant dense<0.000000e+00> : vector<128x18xf32>
    %2 = tpu.matmul %0, %1, %cst {dimension_numbers = #tpu.dot_dimension_numbers<[1], [0], [0], [1], [0, 0, 1, 1], [], []>} : vector<128x36xbf16>, vector<36x18xbf16>, vector<128x18xf32> -> vector<128x18xf32>
    %c0_3 = arith.constant 0 : index
    %c0_4 = arith.constant 0 : index
    %3 = vector.load %arg3[%c0_3, %c0_4] : memref<1x18xf32, #tpu.memory_space<vmem>>, vector<1x18xf32>
    %4 = vector.broadcast %3 : vector<1x18xf32> to vector<128x18xf32>
    %5 = arith.addf %2, %4 : vector<128x18xf32>
    %c0_5 = arith.constant 0 : index
    %c0_6 = arith.constant 0 : index
    %6 = vector.load %arg4[%c0_5, %c0_6] : memref<128x18xf32, #tpu.memory_space<vmem>>, vector<128x18xf32>
    tpu.vector_store %arg4[%c0_5, %c0_6], %5 {strides = array<i32>} : memref<128x18xf32, #tpu.memory_space<vmem>>, vector<128x18xf32>,
    return
  }
  func.func @transform_0(%arg0: i32) -> (i32, i32) {
    %c0_i32 = arith.constant 0 : i32
    %c0_i32_0 = arith.constant 0 : i32
    return %arg0, %c0_i32 : i32, i32
  }
  func.func @transform_1(%arg0: i32) -> (i32, i32) {
    %c0_i32 = arith.constant 0 : i32
    %c0_i32_0 = arith.constant 0 : i32
    %c0_i32_1 = arith.constant 0 : i32
    return %c0_i32, %c0_i32_0 : i32, i32
  }
  func.func @transform_2(%arg0: i32) -> (i32, i32) {
    %c0_i32 = arith.constant 0 : i32
    %c0_i32_0 = arith.constant 0 : i32
    %c0_i32_1 = arith.constant 0 : i32
    return %c0_i32, %c0_i32_0 : i32, i32
  }
  func.func @transform_3(%arg0: i32) -> (i32, i32) {
    %c0_i32 = arith.constant 0 : i32
    %c0_i32_0 = arith.constant 0 : i32
    return %arg0, %c0_i32 : i32, i32
  }
}

module attributes {stable_mosaic.version = 11 : i64} {
  func.func @kernel(%arg0: i32, %arg1: memref<128x36xbf16, #tpu.memory_space<vmem>>, %arg2: memref<36x16xbf16, #tpu.memory_space<vmem>>, %arg3: memref<1x16xf32, #tpu.memory_space<vmem>>, %arg4: memref<1x16xf32, #tpu.memory_space<vmem>>, %arg5: memref<128x16xf32, #tpu.memory_space<vmem>>) attributes {dimension_semantics = [#tpu.dimension_semantics<parallel>], iteration_bounds = array<i64: 1>, scalar_prefetch = 0 : i64, scratch_operands = 0 : i64, tpu.core_type = #tpu.core_type<tc>, window_params = [{transform_indices = @transform_0, window_bounds = array<i64: 128, 36>}, {pipeline_mode = #tpu.pipeline_mode<synchronous>, transform_indices = @transform_1, window_bounds = array<i64: 36, 16>}, {pipeline_mode = #tpu.pipeline_mode<synchronous>, transform_indices = @transform_2, window_bounds = array<i64: 1, 16>}, {pipeline_mode = #tpu.pipeline_mode<synchronous>, transform_indices = @transform_3, window_bounds = array<i64: 1, 16>}, {transform_indices = @transform_4, window_bounds = array<i64: 128, 16>}]} {
    %c0 = arith.constant 0 : index
    %c0_0 = arith.constant 0 : index
    %0 = vector.load %arg1[%c0, %c0_0] : memref<128x36xbf16, #tpu.memory_space<vmem>>, vector<128x36xbf16>
    %c0_1 = arith.constant 0 : index
    %c0_2 = arith.constant 0 : index
    %1 = vector.load %arg2[%c0_1, %c0_2] : memref<36x16xbf16, #tpu.memory_space<vmem>>, vector<36x16xbf16>
    %cst = arith.constant dense<0.000000e+00> : vector<128x16xf32>
    %2 = tpu.matmul %0, %1, %cst {dimension_numbers = #tpu.dot_dimension_numbers<[1], [0], [0], [1], [0, 0, 1, 1], [], []>} : vector<128x36xbf16>, vector<36x16xbf16>, vector<128x16xf32> -> vector<128x16xf32>
    %c0_3 = arith.constant 0 : index
    %c0_4 = arith.constant 0 : index
    %3 = vector.load %arg3[%c0_3, %c0_4] : memref<1x16xf32, #tpu.memory_space<vmem>>, vector<1x16xf32>
    %4 = vector.broadcast %3 : vector<1x16xf32> to vector<128x16xf32>
    %5 = arith.mulf %2, %4 : vector<128x16xf32>
    %c0_5 = arith.constant 0 : index
    %c0_6 = arith.constant 0 : index
    %6 = vector.load %arg4[%c0_5, %c0_6] : memref<1x16xf32, #tpu.memory_space<vmem>>, vector<1x16xf32>
    %7 = vector.broadcast %6 : vector<1x16xf32> to vector<128x16xf32>
    %8 = arith.addf %5, %7 : vector<128x16xf32>
    %c0_7 = arith.constant 0 : index
    %c0_8 = arith.constant 0 : index
    %9 = vector.load %arg5[%c0_7, %c0_8] : memref<128x16xf32, #tpu.memory_space<vmem>>, vector<128x16xf32>
    tpu.vector_store %arg5[%c0_7, %c0_8], %8 {strides = array<i32>} : memref<128x16xf32, #tpu.memory_space<vmem>>, vector<128x16xf32>,
    return
  }
  func.func @transform_0(%arg0: i32) -> (i32, i32) {
    %c0_i32 = arith.constant 0 : i32
    %c0_i32_0 = arith.constant 0 : i32
    return %arg0, %c0_i32 : i32, i32
  }
  func.func @transform_1(%arg0: i32) -> (i32, i32) {
    %c0_i32 = arith.constant 0 : i32
    %c0_i32_0 = arith.constant 0 : i32
    %c0_i32_1 = arith.constant 0 : i32
    return %c0_i32, %c0_i32_0 : i32, i32
  }
  func.func @transform_2(%arg0: i32) -> (i32, i32) {
    %c0_i32 = arith.constant 0 : i32
    %c0_i32_0 = arith.constant 0 : i32
    %c0_i32_1 = arith.constant 0 : i32
    return %c0_i32, %c0_i32_0 : i32, i32
  }
  func.func @transform_3(%arg0: i32) -> (i32, i32) {
    %c0_i32 = arith.constant 0 : i32
    %c0_i32_0 = arith.constant 0 : i32
    %c0_i32_1 = arith.constant 0 : i32
    return %c0_i32, %c0_i32_0 : i32, i32
  }
  func.func @transform_4(%arg0: i32) -> (i32, i32) {
    %c0_i32 = arith.constant 0 : i32
    %c0_i32_0 = arith.constant 0 : i32
    return %arg0, %c0_i32 : i32, i32
  }
}

module attributes {stable_mosaic.version = 11 : i64} {
  func.func @kernel(%arg0: i32, %arg1: memref<128x36xbf16, #tpu.memory_space<vmem>>, %arg2: memref<36x16xbf16, #tpu.memory_space<vmem>>, %arg3: memref<1x16xf32, #tpu.memory_space<vmem>>, %arg4: memref<1x16xf32, #tpu.memory_space<vmem>>, %arg5: memref<128x16xf32, #tpu.memory_space<vmem>>) attributes {dimension_semantics = [#tpu.dimension_semantics<parallel>], iteration_bounds = array<i64: 1>, scalar_prefetch = 0 : i64, scratch_operands = 0 : i64, tpu.core_type = #tpu.core_type<tc>, window_params = [{transform_indices = @transform_0, window_bounds = array<i64: 128, 36>}, {pipeline_mode = #tpu.pipeline_mode<synchronous>, transform_indices = @transform_1, window_bounds = array<i64: 36, 16>}, {pipeline_mode = #tpu.pipeline_mode<synchronous>, transform_indices = @transform_2, window_bounds = array<i64: 1, 16>}, {pipeline_mode = #tpu.pipeline_mode<synchronous>, transform_indices = @transform_3, window_bounds = array<i64: 1, 16>}, {transform_indices = @transform_4, window_bounds = array<i64: 128, 16>}]} {
    %c0 = arith.constant 0 : index
    %c0_0 = arith.constant 0 : index
    %0 = vector.load %arg1[%c0, %c0_0] : memref<128x36xbf16, #tpu.memory_space<vmem>>, vector<128x36xbf16>
    %c0_1 = arith.constant 0 : index
    %c0_2 = arith.constant 0 : index
    %1 = vector.load %arg2[%c0_1, %c0_2] : memref<36x16xbf16, #tpu.memory_space<vmem>>, vector<36x16xbf16>
    %cst = arith.constant dense<0.000000e+00> : vector<128x16xf32>
    %2 = tpu.matmul %0, %1, %cst {dimension_numbers = #tpu.dot_dimension_numbers<[1], [0], [0], [1], [0, 0, 1, 1], [], []>} : vector<128x36xbf16>, vector<36x16xbf16>, vector<128x16xf32> -> vector<128x16xf32>
    %c0_3 = arith.constant 0 : index
    %c0_4 = arith.constant 0 : index
    %3 = vector.load %arg3[%c0_3, %c0_4] : memref<1x16xf32, #tpu.memory_space<vmem>>, vector<1x16xf32>
    %4 = vector.broadcast %3 : vector<1x16xf32> to vector<128x16xf32>
    %5 = arith.mulf %2, %4 : vector<128x16xf32>
    %c0_5 = arith.constant 0 : index
    %c0_6 = arith.constant 0 : index
    %6 = vector.load %arg4[%c0_5, %c0_6] : memref<1x16xf32, #tpu.memory_space<vmem>>, vector<1x16xf32>
    %7 = vector.broadcast %6 : vector<1x16xf32> to vector<128x16xf32>
    %8 = arith.addf %5, %7 : vector<128x16xf32>
    %cst_7 = arith.constant 0.000000e+00 : f32
    %9 = vector.broadcast %cst_7 : f32 to vector<128x16xf32>
    %10 = arith.maximumf %8, %9 : vector<128x16xf32>
    %c0_8 = arith.constant 0 : index
    %c0_9 = arith.constant 0 : index
    %11 = vector.load %arg5[%c0_8, %c0_9] : memref<128x16xf32, #tpu.memory_space<vmem>>, vector<128x16xf32>
    tpu.vector_store %arg5[%c0_8, %c0_9], %10 {strides = array<i32>} : memref<128x16xf32, #tpu.memory_space<vmem>>, vector<128x16xf32>,
    return
  }
  func.func @transform_0(%arg0: i32) -> (i32, i32) {
    %c0_i32 = arith.constant 0 : i32
    %c0_i32_0 = arith.constant 0 : i32
    return %arg0, %c0_i32 : i32, i32
  }
  func.func @transform_1(%arg0: i32) -> (i32, i32) {
    %c0_i32 = arith.constant 0 : i32
    %c0_i32_0 = arith.constant 0 : i32
    %c0_i32_1 = arith.constant 0 : i32
    return %c0_i32, %c0_i32_0 : i32, i32
  }
  func.func @transform_2(%arg0: i32) -> (i32, i32) {
    %c0_i32 = arith.constant 0 : i32
    %c0_i32_0 = arith.constant 0 : i32
    %c0_i32_1 = arith.constant 0 : i32
    return %c0_i32, %c0_i32_0 : i32, i32
  }
  func.func @transform_3(%arg0: i32) -> (i32, i32) {
    %c0_i32 = arith.constant 0 : i32
    %c0_i32_0 = arith.constant 0 : i32
    %c0_i32_1 = arith.constant 0 : i32
    return %c0_i32, %c0_i32_0 : i32, i32
  }
  func.func @transform_4(%arg0: i32) -> (i32, i32) {
    %c0_i32 = arith.constant 0 : i32
    %c0_i32_0 = arith.constant 0 : i32
    return %arg0, %c0_i32 : i32, i32
  }
}

module attributes {stable_mosaic.version = 11 : i64} {
  func.func @kernel(%arg0: i32, %arg1: memref<128x144xbf16, #tpu.memory_space<vmem>>, %arg2: memref<144x18xbf16, #tpu.memory_space<vmem>>, %arg3: memref<1x18xf32, #tpu.memory_space<vmem>>, %arg4: memref<128x18xf32, #tpu.memory_space<vmem>>) attributes {dimension_semantics = [#tpu.dimension_semantics<parallel>], iteration_bounds = array<i64: 1>, scalar_prefetch = 0 : i64, scratch_operands = 0 : i64, tpu.core_type = #tpu.core_type<tc>, window_params = [{transform_indices = @transform_0, window_bounds = array<i64: 128, 144>}, {pipeline_mode = #tpu.pipeline_mode<synchronous>, transform_indices = @transform_1, window_bounds = array<i64: 144, 18>}, {pipeline_mode = #tpu.pipeline_mode<synchronous>, transform_indices = @transform_2, window_bounds = array<i64: 1, 18>}, {transform_indices = @transform_3, window_bounds = array<i64: 128, 18>}]} {
    %c0 = arith.constant 0 : index
    %c0_0 = arith.constant 0 : index
    %0 = vector.load %arg1[%c0, %c0_0] : memref<128x144xbf16, #tpu.memory_space<vmem>>, vector<128x144xbf16>
    %c0_1 = arith.constant 0 : index
    %c0_2 = arith.constant 0 : index
    %1 = vector.load %arg2[%c0_1, %c0_2] : memref<144x18xbf16, #tpu.memory_space<vmem>>, vector<144x18xbf16>
    %cst = arith.constant dense<0.000000e+00> : vector<128x18xf32>
    %2 = tpu.matmul %0, %1, %cst {dimension_numbers = #tpu.dot_dimension_numbers<[1], [0], [0], [1], [0, 0, 1, 1], [], []>} : vector<128x144xbf16>, vector<144x18xbf16>, vector<128x18xf32> -> vector<128x18xf32>
    %c0_3 = arith.constant 0 : index
    %c0_4 = arith.constant 0 : index
    %3 = vector.load %arg3[%c0_3, %c0_4] : memref<1x18xf32, #tpu.memory_space<vmem>>, vector<1x18xf32>
    %4 = vector.broadcast %3 : vector<1x18xf32> to vector<128x18xf32>
    %5 = arith.addf %2, %4 : vector<128x18xf32>
    %c0_5 = arith.constant 0 : index
    %c0_6 = arith.constant 0 : index
    %6 = vector.load %arg4[%c0_5, %c0_6] : memref<128x18xf32, #tpu.memory_space<vmem>>, vector<128x18xf32>
    tpu.vector_store %arg4[%c0_5, %c0_6], %5 {strides = array<i32>} : memref<128x18xf32, #tpu.memory_space<vmem>>, vector<128x18xf32>,
    return
  }
  func.func @transform_0(%arg0: i32) -> (i32, i32) {
    %c0_i32 = arith.constant 0 : i32
    %c0_i32_0 = arith.constant 0 : i32
    return %arg0, %c0_i32 : i32, i32
  }
  func.func @transform_1(%arg0: i32) -> (i32, i32) {
    %c0_i32 = arith.constant 0 : i32
    %c0_i32_0 = arith.constant 0 : i32
    %c0_i32_1 = arith.constant 0 : i32
    return %c0_i32, %c0_i32_0 : i32, i32
  }
  func.func @transform_2(%arg0: i32) -> (i32, i32) {
    %c0_i32 = arith.constant 0 : i32
    %c0_i32_0 = arith.constant 0 : i32
    %c0_i32_1 = arith.constant 0 : i32
    return %c0_i32, %c0_i32_0 : i32, i32
  }
  func.func @transform_3(%arg0: i32) -> (i32, i32) {
    %c0_i32 = arith.constant 0 : i32
    %c0_i32_0 = arith.constant 0 : i32
    return %arg0, %c0_i32 : i32, i32
  }
}

module attributes {stable_mosaic.version = 11 : i64} {
  func.func @kernel(%arg0: i32, %arg1: memref<128x144xbf16, #tpu.memory_space<vmem>>, %arg2: memref<144x16xbf16, #tpu.memory_space<vmem>>, %arg3: memref<1x16xf32, #tpu.memory_space<vmem>>, %arg4: memref<1x16xf32, #tpu.memory_space<vmem>>, %arg5: memref<128x16xf32, #tpu.memory_space<vmem>>, %arg6: memref<128x16xf32, #tpu.memory_space<vmem>>) attributes {dimension_semantics = [#tpu.dimension_semantics<parallel>], iteration_bounds = array<i64: 1>, scalar_prefetch = 0 : i64, scratch_operands = 0 : i64, tpu.core_type = #tpu.core_type<tc>, window_params = [{transform_indices = @transform_0, window_bounds = array<i64: 128, 144>}, {pipeline_mode = #tpu.pipeline_mode<synchronous>, transform_indices = @transform_1, window_bounds = array<i64: 144, 16>}, {pipeline_mode = #tpu.pipeline_mode<synchronous>, transform_indices = @transform_2, window_bounds = array<i64: 1, 16>}, {pipeline_mode = #tpu.pipeline_mode<synchronous>, transform_indices = @transform_3, window_bounds = array<i64: 1, 16>}, {transform_indices = @transform_4, window_bounds = array<i64: 128, 16>}, {transform_indices = @transform_5, window_bounds = array<i64: 128, 16>}]} {
    %c0 = arith.constant 0 : index
    %c0_0 = arith.constant 0 : index
    %0 = vector.load %arg1[%c0, %c0_0] : memref<128x144xbf16, #tpu.memory_space<vmem>>, vector<128x144xbf16>
    %c0_1 = arith.constant 0 : index
    %c0_2 = arith.constant 0 : index
    %1 = vector.load %arg2[%c0_1, %c0_2] : memref<144x16xbf16, #tpu.memory_space<vmem>>, vector<144x16xbf16>
    %cst = arith.constant dense<0.000000e+00> : vector<128x16xf32>
    %2 = tpu.matmul %0, %1, %cst {dimension_numbers = #tpu.dot_dimension_numbers<[1], [0], [0], [1], [0, 0, 1, 1], [], []>} : vector<128x144xbf16>, vector<144x16xbf16>, vector<128x16xf32> -> vector<128x16xf32>
    %c0_3 = arith.constant 0 : index
    %c0_4 = arith.constant 0 : index
    %3 = vector.load %arg3[%c0_3, %c0_4] : memref<1x16xf32, #tpu.memory_space<vmem>>, vector<1x16xf32>
    %4 = vector.broadcast %3 : vector<1x16xf32> to vector<128x16xf32>
    %5 = arith.mulf %2, %4 : vector<128x16xf32>
    %c0_5 = arith.constant 0 : index
    %c0_6 = arith.constant 0 : index
    %6 = vector.load %arg4[%c0_5, %c0_6] : memref<1x16xf32, #tpu.memory_space<vmem>>, vector<1x16xf32>
    %7 = vector.broadcast %6 : vector<1x16xf32> to vector<128x16xf32>
    %8 = arith.addf %5, %7 : vector<128x16xf32>
    %c0_7 = arith.constant 0 : index
    %c0_8 = arith.constant 0 : index
    %9 = vector.load %arg5[%c0_7, %c0_8] : memref<128x16xf32, #tpu.memory_space<vmem>>, vector<128x16xf32>
    %10 = arith.addf %8, %9 : vector<128x16xf32>
    %cst_9 = arith.constant 0.000000e+00 : f32
    %11 = vector.broadcast %cst_9 : f32 to vector<128x16xf32>
    %12 = arith.maximumf %10, %11 : vector<128x16xf32>
    %c0_10 = arith.constant 0 : index
    %c0_11 = arith.constant 0 : index
    %13 = vector.load %arg6[%c0_10, %c0_11] : memref<128x16xf32, #tpu.memory_space<vmem>>, vector<128x16xf32>
    tpu.vector_store %arg6[%c0_10, %c0_11], %12 {strides = array<i32>} : memref<128x16xf32, #tpu.memory_space<vmem>>, vector<128x16xf32>,
    return
  }
  func.func @transform_0(%arg0: i32) -> (i32, i32) {
    %c0_i32 = arith.constant 0 : i32
    %c0_i32_0 = arith.constant 0 : i32
    return %arg0, %c0_i32 : i32, i32
  }
  func.func @transform_1(%arg0: i32) -> (i32, i32) {
    %c0_i32 = arith.constant 0 : i32
    %c0_i32_0 = arith.constant 0 : i32
    %c0_i32_1 = arith.constant 0 : i32
    return %c0_i32, %c0_i32_0 : i32, i32
  }
  func.func @transform_2(%arg0: i32) -> (i32, i32) {
    %c0_i32 = arith.constant 0 : i32
    %c0_i32_0 = arith.constant 0 : i32
    %c0_i32_1 = arith.constant 0 : i32
    return %c0_i32, %c0_i32_0 : i32, i32
  }
  func.func @transform_3(%arg0: i32) -> (i32, i32) {
    %c0_i32 = arith.constant 0 : i32
    %c0_i32_0 = arith.constant 0 : i32
    %c0_i32_1 = arith.constant 0 : i32
    return %c0_i32, %c0_i32_0 : i32, i32
  }
  func.func @transform_4(%arg0: i32) -> (i32, i32) {
    %c0_i32 = arith.constant 0 : i32
    %c0_i32_0 = arith.constant 0 : i32
    return %arg0, %c0_i32 : i32, i32
  }
  func.func @transform_5(%arg0: i32) -> (i32, i32) {
    %c0_i32 = arith.constant 0 : i32
    %c0_i32_0 = arith.constant 0 : i32
    return %arg0, %c0_i32 : i32, i32
  }
}

</mosaic_0001>

<llo_original>
// kernel: deform_block_forward.6
$region0: #{deform_block_forward.6}
  #allocation0 [shape = 'u32[]', space=smem, size = 0x4, offset = 0x4, fixed_abs, tag = 'smem constant byte address 0x4 - core index']
  #allocation1 [shape = 'u32[144,128]{1,0:T(1,128)}', space=vmem, size = 0x12000, scoped, tag = 'internal scratch']
  %s0 = inlined_call_operand.vmem [shape: bf16[128,36], index: 0, kind: input, shape index: {}]
  %s1 = inlined_call_operand.vmem [shape: bf16[36,18], index: 1, kind: input, shape index: {}]
  %s2 = inlined_call_operand.vmem [shape: f32[1,18], index: 2, kind: input, shape index: {}]
  %s3 = inlined_call_operand.vmem [shape: f32[128,18], index: 3, kind: output, shape index: {}]
  %s4 = sld [smem:[#allocation0]]
  $region22: #{deform_block_forward.6} parent=0
    _
  %s6 = ssub.s32 1, %s4
  %s7 = scalar_select 0, %s6, %s4
  // Predicated region
  $region2: #{deform_block_forward.6} parent=0 // pred_check
    _
  $region3: #{deform_block_forward.6} parent=0 // pred_check_branch
    %9 = sbr.rel (0) target = $region5
  $region4: #{deform_block_forward.6} parent=0 // pred_region
    _
  $region5: #{deform_block_forward.6} parent=0 // pred_fallthru
    _
  // Predicated region
  $region6: #{deform_block_forward.6} parent=0 // pred_check
    _
  $region7: #{deform_block_forward.6} parent=0 // pred_check_branch
    %11 = sbr.rel (0) target = $region9
  $region8: #{deform_block_forward.6} parent=0 // pred_region
    _
  $region9: #{deform_block_forward.6} parent=0 // pred_fallthru
    _
  // Predicated region
  $region10: #{deform_block_forward.6} parent=0 // pred_check
    _
  $region11: #{deform_block_forward.6} parent=0 // pred_check_branch
    %13 = sbr.rel (0) target = $region13
  $region12: #{deform_block_forward.6} parent=0 // pred_region
    _
  $region13: #{deform_block_forward.6} parent=0 // pred_fallthru
    _
  %v15 = vld [vmem:[%s0] sm:$0xf]
  %v16 = vld [vmem:[%s0 + $0x4] sm:$0xf]
  %v17 = vld [vmem:[%s0 + $0x8] sm:$0xf]
  %v18 = vld [vmem:[%s0 + $0xc] sm:$0xf]
  %v19 = vld [vmem:[%s0 + $0x10] sm:$0xf]
  %v20 = vld [vmem:[%s0 + $0x14] sm:$0xf]
  %v21 = vld [vmem:[%s0 + $0x18] sm:$0xf]
  %v22 = vld [vmem:[%s0 + $0x1c] sm:$0xf]
  %v23 = vld [vmem:[%s0 + $0x20] sm:$0xf]
  %v24 = vld [vmem:[%s0 + $0x24] sm:$0xf]
  %v25 = vld [vmem:[%s0 + $0x28] sm:$0xf]
  %v26 = vld [vmem:[%s0 + $0x2c] sm:$0xf]
  %v27 = vld [vmem:[%s0 + $0x30] sm:$0xf]
  %v28 = vld [vmem:[%s0 + $0x34] sm:$0xf]
  %v29 = vld [vmem:[%s0 + $0x38] sm:$0xf]
  %v30 = vld [vmem:[%s0 + $0x3c] sm:$0xf]
  %v31 = vld [vmem:[%s1] sm:$0xf]
  %v32 = vld [vmem:[%s1 + $0x4] sm:$0xf]
  %v33 = vld [vmem:[%s1 + $0x8] sm:$0xf]
  %v34 = vld [vmem:[%s1 + $0xc] sm:$0xf]
  %v35 = vld [vmem:[%s1 + $0x10] sm:$0x3]
  %v36 = vld [vmem:[%s2] sm:$0x1]
  %v38 = vlaneseq
  %v39 = vshrl.u32 %v38, 7
  %v40 = vsub.s32 0, %v39
  %v41 = vrot.slane %v36, %v40
  %v59 = vunpack.c.l.b16 %v15
  %v60 = vunpack.c.l.b16 %v16
  %v61 = vunpack.c.l.b16 %v17
  %v62 = vunpack.c.l.b16 %v18
  %v63 = vunpack.c.l.b16 %v19
  %v64 = vunpack.c.l.b16 %v20
  %v65 = vunpack.c.l.b16 %v21
  %v66 = vunpack.c.l.b16 %v22
  %v67 = vunpack.c.l.b16 %v23
  %v68 = vunpack.c.l.b16 %v24
  %v69 = vunpack.c.l.b16 %v25
  %v70 = vunpack.c.l.b16 %v26
  %v71 = vunpack.c.l.b16 %v27
  %v72 = vunpack.c.l.b16 %v28
  %v73 = vunpack.c.l.b16 %v29
  %v74 = vunpack.c.l.b16 %v30
  %v75 = vpack.c.b16 %v60, %v59
  %v76 = vpack.c.b16 %v62, %v61
  %v77 = vpack.c.b16 %v64, %v63
  %v78 = vpack.c.b16 %v66, %v65
  %v79 = vpack.c.b16 %v68, %v67
  %v80 = vpack.c.b16 %v70, %v69
  %v81 = vpack.c.b16 %v72, %v71
  %v82 = vpack.c.b16 %v74, %v73
  %v88 = vunpack.c.l.b16 %v31
  %v89 = vunpack.c.l.b16 %v32
  %v90 = vunpack.c.l.b16 %v33
  %v91 = vunpack.c.l.b16 %v34
  %v92 = vunpack.c.l.b16 %v35
  %v93 = vpack.c.b16 %v89, %v88
  %v94 = vpack.c.b16 %v91, %v90
  %v95 = vpack.c.b16 %v92, %v92
  %vm98 = vcmask 293888
  %v100 = vsel %vm98, %v75, 0
  %v103 = vsel %vm98, %v76, 0
  %v106 = vsel %vm98, %v77, 0
  %v109 = vsel %vm98, %v78, 0
  %v112 = vsel %vm98, %v79, 0
  %v115 = vsel %vm98, %v80, 0
  %v118 = vsel %vm98, %v81, 0
  %v121 = vsel %vm98, %v82, 0
  %vm123 = vcmask 1041408
  %v125 = vsel %vm123, %v95, 0
  %127 = vmatprep.subr.bf16.mxu0 0
  %128 = vmatpush1.bf16.msra.mxu0 0
  %129 = vmatprep.subr.bf16.mxu0 0
  %130 = vmatpush1.bf16.msra.mxu0 0
  %131 = vmatprep.subr.bf16.mxu0 0
  %132 = vmatpush1.bf16.msra.mxu0 0
  %133 = vmatprep.subr.bf16.mxu0 0
  %134 = vmatpush1.bf16.msra.mxu0 0
  %135 = vmatprep.subr.bf16.mxu0 0
  %136 = vmatpush1.bf16.msra.mxu0 0
  %137 = vmatprep.subr.bf16.mxu0 0
  %138 = vmatpush1.bf16.msra.mxu0 %v125
  %139 = vmatprep.subr.bf16.mxu0 0
  %140 = vmatpush1.bf16.msra.mxu0 %v94
  %141 = vmatprep.subr.bf16.mxu0 0
  %142 = vmatpush1.bf16.msra.mxu0 %v93
  %143 = vmatprep.subr.bf16.mxu0 0
  %144 = vmatpush2.bf16.msra.mxu0 0
  %145 = vmatprep.subr.bf16.mxu0 0
  %146 = vmatpush2.bf16.msra.mxu0 0
  %147 = vmatprep.subr.bf16.mxu0 0
  %148 = vmatpush2.bf16.msra.mxu0 0
  %149 = vmatprep.subr.bf16.mxu0 0
  %150 = vmatpush2.bf16.msra.mxu0 0
  %151 = vmatprep.subr.bf16.mxu0 0
  %152 = vmatpush2.bf16.msra.mxu0 0
  %153 = vmatprep.subr.bf16.mxu0 0
  %154 = vmatpush2.bf16.msra.mxu0 0
  %155 = vmatprep.subr.bf16.mxu0 0
  %156 = vmatpush2.bf16.msra.mxu0 0
  %157 = vmatprep.subr.bf16.mxu0 0
  %158 = vmatpush2.bf16.msra.mxu0 0
  %159 = vmatprep.mubr.bf16.mxu0 0
  %160 = vmatmul.mubr.bf16.gmra.mxu0 %v100
  %v161 = vpop.f32.mrf.mxu0
  %v162 = vadd.f32 %v41, %v161
  %v163 = vpop.f32.mrf.mxu0
  %v164 = vpop.f32.mrf.mxu0
  %v165 = vadd.f32 %v41, %v164
  %v166 = vpop.f32.mrf.mxu0
  %167 = vmatprep.mubr.bf16.mxu0 0
  %168 = vmatmul.mubr.bf16.gmra.mxu0 %v103
  %v169 = vpop.f32.mrf.mxu0
  %v170 = vadd.f32 %v41, %v169
  %v171 = vpop.f32.mrf.mxu0
  %v172 = vpop.f32.mrf.mxu0
  %v173 = vadd.f32 %v41, %v172
  %v174 = vpop.f32.mrf.mxu0
  %175 = vmatprep.mubr.bf16.mxu0 0
  %176 = vmatmul.mubr.bf16.gmra.mxu0 %v106
  %v177 = vpop.f32.mrf.mxu0
  %v178 = vadd.f32 %v41, %v177
  %v179 = vpop.f32.mrf.mxu0
  %v180 = vpop.f32.mrf.mxu0
  %v181 = vadd.f32 %v41, %v180
  %v182 = vpop.f32.mrf.mxu0
  %183 = vmatprep.mubr.bf16.mxu0 0
  %184 = vmatmul.mubr.bf16.gmra.mxu0 %v109
  %v185 = vpop.f32.mrf.mxu0
  %v186 = vadd.f32 %v41, %v185
  %v187 = vpop.f32.mrf.mxu0
  %v188 = vpop.f32.mrf.mxu0
  %v189 = vadd.f32 %v41, %v188
  %v190 = vpop.f32.mrf.mxu0
  %191 = vmatprep.mubr.bf16.mxu0 0
  %192 = vmatmul.mubr.bf16.gmra.mxu0 %v112
  %v193 = vpop.f32.mrf.mxu0
  %v194 = vadd.f32 %v41, %v193
  %v195 = vpop.f32.mrf.mxu0
  %v196 = vpop.f32.mrf.mxu0
  %v197 = vadd.f32 %v41, %v196
  %v198 = vpop.f32.mrf.mxu0
  %199 = vmatprep.mubr.bf16.mxu0 0
  %200 = vmatmul.mubr.bf16.gmra.mxu0 %v115
  %v201 = vpop.f32.mrf.mxu0
  %v202 = vadd.f32 %v41, %v201
  %v203 = vpop.f32.mrf.mxu0
  %v204 = vpop.f32.mrf.mxu0
  %v205 = vadd.f32 %v41, %v204
  %v206 = vpop.f32.mrf.mxu0
  %207 = vmatprep.mubr.bf16.mxu0 0
  %208 = vmatmul.mubr.bf16.gmra.mxu0 %v118
  %v209 = vpop.f32.mrf.mxu0
  %v210 = vadd.f32 %v41, %v209
  %v211 = vpop.f32.mrf.mxu0
  %v212 = vpop.f32.mrf.mxu0
  %v213 = vadd.f32 %v41, %v212
  %v214 = vpop.f32.mrf.mxu0
  %215 = vmatprep.mubr.bf16.mxu0 0
  %216 = vmatmul.mubr.bf16.gmra.mxu0 %v121
  %v217 = vpop.f32.mrf.mxu0
  %v218 = vadd.f32 %v41, %v217
  %v219 = vpop.f32.mrf.mxu0
  %v220 = vpop.f32.mrf.mxu0
  %v221 = vadd.f32 %v41, %v220
  %v222 = vpop.f32.mrf.mxu0
  %223 = vdwg.mxu0
  %vm224 = vcmask 146432
  %225 = vst.msk [vmem:[%s3] sm:$0xff] %vm224, %v162
  %226 = vst.msk [vmem:[%s3 + $0x8] sm:$0xff] %vm224, %v165
  %227 = vst.msk [vmem:[%s3 + $0x10] sm:$0xff] %vm224, %v170
  %228 = vst.msk [vmem:[%s3 + $0x18] sm:$0xff] %vm224, %v173
  %229 = vst.msk [vmem:[%s3 + $0x20] sm:$0xff] %vm224, %v178
  %230 = vst.msk [vmem:[%s3 + $0x28] sm:$0xff] %vm224, %v181
  %231 = vst.msk [vmem:[%s3 + $0x30] sm:$0xff] %vm224, %v186
  %232 = vst.msk [vmem:[%s3 + $0x38] sm:$0xff] %vm224, %v189
  %233 = vst.msk [vmem:[%s3 + $0x40] sm:$0xff] %vm224, %v194
  %234 = vst.msk [vmem:[%s3 + $0x48] sm:$0xff] %vm224, %v197
  %235 = vst.msk [vmem:[%s3 + $0x50] sm:$0xff] %vm224, %v202
  %236 = vst.msk [vmem:[%s3 + $0x58] sm:$0xff] %vm224, %v205
  %237 = vst.msk [vmem:[%s3 + $0x60] sm:$0xff] %vm224, %v210
  %238 = vst.msk [vmem:[%s3 + $0x68] sm:$0xff] %vm224, %v213
  %239 = vst.msk [vmem:[%s3 + $0x70] sm:$0xff] %vm224, %v218
  %240 = vst.msk [vmem:[%s3 + $0x78] sm:$0xff] %vm224, %v221
  // Predicated region
  $region14: #{deform_block_forward.6} parent=0 // pred_check
    _
  $region15: #{deform_block_forward.6} parent=0 // pred_check_branch
    %242 = sbr.rel (0) target = $region17
  $region16: #{deform_block_forward.6} parent=0 // pred_region
    _
  $region17: #{deform_block_forward.6} parent=0 // pred_fallthru
    _
  // Predicated region
  $region18: #{deform_block_forward.6} parent=0 // pred_check
    _
  $region19: #{deform_block_forward.6} parent=0 // pred_check_branch
    %244 = sbr.rel (0) target = $region21
  $region20: #{deform_block_forward.6} parent=0 // pred_region
    _
  $region21: #{deform_block_forward.6} parent=0 // pred_fallthru
    _

// kernel: mul.102
$region0: #{mul.102}
  %s0 = inlined_call_operand.vmem [shape: f32[2,8,8,9], index: 0, kind: input, shape index: {}]
  %s1 = inlined_call_operand.vmem [shape: f32[2,576], index: 1, kind: output, shape index: {}]
  $region1: #{mul.102} parent=0
    #allocation0 [shape = 'u8[20480]{0}', space=vmem, size = 0x5000, scoped, tag = 'scoped mem for output reshape']
    %v2 = vld [vmem:[%s0] sm:$0x1]
    %s3 = scalar_lea.vmem %s0, 63
    %v4 = vld [vmem:[%s3] sm:$0x2]
    %vm5 = vcmask 1041409
    %v6 = vsel %vm5, %v4, %v2
    %vm7 = vcmask 72704
    %8 = vst.msk [vmem:[#allocation0] sm:$0x3] %vm7, %v6
    %s9 = scalar_lea.vmem %s0, 14
    %v10 = vld [vmem:[%s9] sm:$0x1]
    %s11 = scalar_lea.vmem %s0, 77
    %v12 = vld [vmem:[%s11] sm:$0x2]
    %vm13 = vcmask 1041409
    %v14 = vsel %vm13, %v12, %v10
    %s15 = scalar_lea.vmem %s0, 14
    %v16 = vld [vmem:[%s15] sm:$0x1]
    %s17 = scalar_lea.vmem %s0, 77
    %v18 = vld [vmem:[%s17] sm:$0x2]
    %vm19 = vcmask 1041409
    %v20 = vsel %vm19, %v18, %v16
    %vm21 = vcmask 15360
    %v22 = vsel %vm21, %v20, %v14
    %23 = vrot.lane.b32.xlu0 %v22, 126
    %v24 = vpop.permute.xlu0 %23
    %vm25 = vcmask 56320
    %s26 = scalar_lea.vmem [#allocation0], 8
    %27 = vst.msk [vmem:[%s26] sm:$0x3] %vm25, %v24
    %vm28 = vcmask 1048560
    %29 = vst.msk [vmem:[#allocation0] sm:$0x3] %vm28, %v24
    %s30 = scalar_lea.vmem %s0, 28
    %v31 = vld [vmem:[%s30] sm:$0x1]
    %s32 = scalar_lea.vmem %s0, 91
    %v33 = vld [vmem:[%s32] sm:$0x2]
    %vm34 = vcmask 1041409
    %v35 = vsel %vm34, %v33, %v31
    %s36 = scalar_lea.vmem %s0, 28
    %v37 = vld [vmem:[%s36] sm:$0x1]
    %s38 = scalar_lea.vmem %s0, 91
    %v39 = vld [vmem:[%s38] sm:$0x2]
    %vm40 = vcmask 1041409
    %v41 = vsel %vm40, %v39, %v37
    %vm42 = vcmask 31744
    %v43 = vsel %vm42, %v41, %v35
    %44 = vrot.lane.b32.xlu0 %v43, 124
    %v45 = vpop.permute.xlu0 %44
    %vm46 = vcmask 39936
    %s47 = scalar_lea.vmem [#allocation0], 16
    %48 = vst.msk [vmem:[%s47] sm:$0x3] %vm46, %v45
    %vm49 = vcmask 1048544
    %s50 = scalar_lea.vmem [#allocation0], 8
    %51 = vst.msk [vmem:[%s50] sm:$0x3] %vm49, %v45
    %s52 = scalar_lea.vmem %s0, 42
    %v53 = vld [vmem:[%s52] sm:$0x1]
    %s54 = scalar_lea.vmem %s0, 105
    %v55 = vld [vmem:[%s54] sm:$0x2]
    %vm56 = vcmask 1041409
    %v57 = vsel %vm56, %v55, %v53
    %s58 = scalar_lea.vmem %s0, 42
    %v59 = vld [vmem:[%s58] sm:$0x1]
    %s60 = scalar_lea.vmem %s0, 105
    %v61 = vld [vmem:[%s60] sm:$0x2]
    %vm62 = vcmask 1041409
    %v63 = vsel %vm62, %v61, %v59
    %vm64 = vcmask 48128
    %v65 = vsel %vm64, %v63, %v57
    %66 = vrot.lane.b32.xlu0 %v65, 122
    %v67 = vpop.permute.xlu0 %66
    %vm68 = vcmask 23552
    %s69 = scalar_lea.vmem [#allocation0], 24
    %70 = vst.msk [vmem:[%s69] sm:$0x3] %vm68, %v67
    %vm71 = vcmask 1048528
    %s72 = scalar_lea.vmem [#allocation0], 16
    %73 = vst.msk [vmem:[%s72] sm:$0x3] %vm71, %v67
    %s74 = scalar_lea.vmem %s0, 56
    %v75 = vld [vmem:[%s74] sm:$0x1]
    %s76 = scalar_lea.vmem %s0, 119
    %v77 = vld [vmem:[%s76] sm:$0x2]
    %vm78 = vcmask 1041409
    %v79 = vsel %vm78, %v77, %v75
    %s80 = scalar_lea.vmem %s0, 56
    %v81 = vld [vmem:[%s80] sm:$0x1]
    %s82 = scalar_lea.vmem %s0, 119
    %v83 = vld [vmem:[%s82] sm:$0x2]
    %vm84 = vcmask 1041409
    %v85 = vsel %vm84, %v83, %v81
    %vm86 = vcmask 64512
    %v87 = vsel %vm86, %v85, %v79
    %88 = vrot.lane.b32.xlu0 %v87, 120
    %v89 = vpop.permute.xlu0 %88
    %vm90 = vcmask 7168
    %s91 = scalar_lea.vmem [#allocation0], 32
    %92 = vst.msk [vmem:[%s91] sm:$0x3] %vm90, %v89
    %vm93 = vcmask 1048512
    %s94 = scalar_lea.vmem [#allocation0], 24
    %95 = vst.msk [vmem:[%s94] sm:$0x3] %vm93, %v89
    %s96 = scalar_lea.vmem %s0, 13
    %v97 = vld [vmem:[%s96] sm:$0x1]
    %s98 = scalar_lea.vmem %s0, 76
    %v99 = vld [vmem:[%s98] sm:$0x2]
    %vm100 = vcmask 1041409
    %v101 = vsel %vm100, %v99, %v97
    %102 = vrot.lane.b32.xlu0 %v101, 117
    %v103 = vpop.permute.xlu0 %102
    %vm104 = vcmask 1032104
    %105 = vst.msk [vmem:[#allocation0] sm:$0x3] %vm104, %v103
    %s106 = scalar_lea.vmem %s0, 27
    %v107 = vld [vmem:[%s106] sm:$0x1]
    %s108 = scalar_lea.vmem %s0, 90
    %v109 = vld [vmem:[%s108] sm:$0x2]
    %vm110 = vcmask 1041409
    %v111 = vsel %vm110, %v109, %v107
    %112 = vrot.lane.b32.xlu0 %v111, 115
    %v113 = vpop.permute.xlu0 %112
    %vm114 = vcmask 1015704
    %s115 = scalar_lea.vmem [#allocation0], 8
    %116 = vst.msk [vmem:[%s115] sm:$0x3] %vm114, %v113
    %s117 = scalar_lea.vmem %s0, 41
    %v118 = vld [vmem:[%s117] sm:$0x1]
    %s119 = scalar_lea.vmem %s0, 104
    %v120 = vld [vmem:[%s119] sm:$0x2]
    %vm121 = vcmask 1041409
    %v122 = vsel %vm121, %v120, %v118
    %123 = vrot.lane.b32.xlu0 %v122, 113
    %v124 = vpop.permute.xlu0 %123
    %vm125 = vcmask 999304
    %s126 = scalar_lea.vmem [#allocation0], 16
    %127 = vst.msk [vmem:[%s126] sm:$0x3] %vm125, %v124
    %s128 = scalar_lea.vmem %s0, 55
    %v129 = vld [vmem:[%s128] sm:$0x1]
    %s130 = scalar_lea.vmem %s0, 118
    %v131 = vld [vmem:[%s130] sm:$0x2]
    %vm132 = vcmask 1041409
    %v133 = vsel %vm132, %v131, %v129
    %134 = vrot.lane.b32.xlu0 %v133, 111
    %v135 = vpop.permute.xlu0 %134
    %vm136 = vcmask 982904
    %s137 = scalar_lea.vmem [#allocation0], 24
    %138 = vst.msk [vmem:[%s137] sm:$0x3] %vm136, %v135
    %s139 = scalar_lea.vmem %s0, 12
    %v140 = vld [vmem:[%s139] sm:$0x1]
    %s141 = scalar_lea.vmem %s0, 75
    %v142 = vld [vmem:[%s141] sm:$0x2]
    %vm143 = vcmask 1041409
    %v144 = vsel %vm143, %v142, %v140
    %145 = vrot.lane.b32.xlu0 %v144, 108
    %v146 = vpop.permute.xlu0 %145
    %vm147 = vcmask 958304
    %148 = vst.msk [vmem:[#allocation0] sm:$0x3] %vm147, %v146
    %s149 = scalar_lea.vmem %s0, 26
    %v150 = vld [vmem:[%s149] sm:$0x1]
    %s151 = scalar_lea.vmem %s0, 89
    %v152 = vld [vmem:[%s151] sm:$0x2]
    %vm153 = vcmask 1041409
    %v154 = vsel %vm153, %v152, %v150
    %155 = vrot.lane.b32.xlu0 %v154, 106
    %v156 = vpop.permute.xlu0 %155
    %vm157 = vcmask 941904
    %s158 = scalar_lea.vmem [#allocation0], 8
    %159 = vst.msk [vmem:[%s158] sm:$0x3] %vm157, %v156
    %s160 = scalar_lea.vmem %s0, 40
    %v161 = vld [vmem:[%s160] sm:$0x1]
    %s162 = scalar_lea.vmem %s0, 103
    %v163 = vld [vmem:[%s162] sm:$0x2]
    %vm164 = vcmask 1041409
    %v165 = vsel %vm164, %v163, %v161
    %166 = vrot.lane.b32.xlu0 %v165, 104
    %v167 = vpop.permute.xlu0 %166
    %vm168 = vcmask 925504
    %s169 = scalar_lea.vmem [#allocation0], 16
    %170 = vst.msk [vmem:[%s169] sm:$0x3] %vm168, %v167
    %s171 = scalar_lea.vmem %s0, 54
    %v172 = vld [vmem:[%s171] sm:$0x1]
    %s173 = scalar_lea.vmem %s0, 117
    %v174 = vld [vmem:[%s173] sm:$0x2]
    %vm175 = vcmask 1041409
    %v176 = vsel %vm175, %v174, %v172
    %177 = vrot.lane.b32.xlu0 %v176, 102
    %v178 = vpop.permute.xlu0 %177
    %vm179 = vcmask 909104
    %s180 = scalar_lea.vmem [#allocation0], 24
    %181 = vst.msk [vmem:[%s180] sm:$0x3] %vm179, %v178
    %s182 = scalar_lea.vmem %s0, 11
    %v183 = vld [vmem:[%s182] sm:$0x1]
    %s184 = scalar_lea.vmem %s0, 74
    %v185 = vld [vmem:[%s184] sm:$0x2]
    %vm186 = vcmask 1041409
    %v187 = vsel %vm186, %v185, %v183
    %188 = vrot.lane.b32.xlu0 %v187, 99
    %v189 = vpop.permute.xlu0 %188
    %vm190 = vcmask 884504
    %191 = vst.msk [vmem:[#allocation0] sm:$0x3] %vm190, %v189
    %s192 = scalar_lea.vmem %s0, 25
    %v193 = vld [vmem:[%s192] sm:$0x1]
    %s194 = scalar_lea.vmem %s0, 88
    %v195 = vld [vmem:[%s194] sm:$0x2]
    %vm196 = vcmask 1041409
    %v197 = vsel %vm196, %v195, %v193
    %198 = vrot.lane.b32.xlu0 %v197, 97
    %v199 = vpop.permute.xlu0 %198
    %vm200 = vcmask 868104
    %s201 = scalar_lea.vmem [#allocation0], 8
    %202 = vst.msk [vmem:[%s201] sm:$0x3] %vm200, %v199
    %s203 = scalar_lea.vmem %s0, 39
    %v204 = vld [vmem:[%s203] sm:$0x1]
    %s205 = scalar_lea.vmem %s0, 102
    %v206 = vld [vmem:[%s205] sm:$0x2]
    %vm207 = vcmask 1041409
    %v208 = vsel %vm207, %v206, %v204
    %209 = vrot.lane.b32.xlu0 %v208, 95
    %v210 = vpop.permute.xlu0 %209
    %vm211 = vcmask 851704
    %s212 = scalar_lea.vmem [#allocation0], 16
    %213 = vst.msk [vmem:[%s212] sm:$0x3] %vm211, %v210
    %s214 = scalar_lea.vmem %s0, 53
    %v215 = vld [vmem:[%s214] sm:$0x1]
    %s216 = scalar_lea.vmem %s0, 116
    %v217 = vld [vmem:[%s216] sm:$0x2]
    %vm218 = vcmask 1041409
    %v219 = vsel %vm218, %v217, %v215
    %220 = vrot.lane.b32.xlu0 %v219, 93
    %v221 = vpop.permute.xlu0 %220
    %vm222 = vcmask 835304
    %s223 = scalar_lea.vmem [#allocation0], 24
    %224 = vst.msk [vmem:[%s223] sm:$0x3] %vm222, %v221
    %s225 = scalar_lea.vmem %s0, 10
    %v226 = vld [vmem:[%s225] sm:$0x1]
    %s227 = scalar_lea.vmem %s0, 73
    %v228 = vld [vmem:[%s227] sm:$0x2]
    %vm229 = vcmask 1041409
    %v230 = vsel %vm229, %v228, %v226
    %231 = vrot.lane.b32.xlu0 %v230, 90
    %v232 = vpop.permute.xlu0 %231
    %vm233 = vcmask 810704
    %234 = vst.msk [vmem:[#allocation0] sm:$0x3] %vm233, %v232
    %s235 = scalar_lea.vmem %s0, 24
    %v236 = vld [vmem:[%s235] sm:$0x1]
    %s237 = scalar_lea.vmem %s0, 87
    %v238 = vld [vmem:[%s237] sm:$0x2]
    %vm239 = vcmask 1041409
    %v240 = vsel %vm239, %v238, %v236
    %241 = vrot.lane.b32.xlu0 %v240, 88
    %v242 = vpop.permute.xlu0 %241
    %vm243 = vcmask 794304
    %s244 = scalar_lea.vmem [#allocation0], 8
    %245 = vst.msk [vmem:[%s244] sm:$0x3] %vm243, %v242
    %s246 = scalar_lea.vmem %s0, 38
    %v247 = vld [vmem:[%s246] sm:$0x1]
    %s248 = scalar_lea.vmem %s0, 101
    %v249 = vld [vmem:[%s248] sm:$0x2]
    %vm250 = vcmask 1041409
    %v251 = vsel %vm250, %v249, %v247
    %252 = vrot.lane.b32.xlu0 %v251, 86
    %v253 = vpop.permute.xlu0 %252
    %vm254 = vcmask 777904
    %s255 = scalar_lea.vmem [#allocation0], 16
    %256 = vst.msk [vmem:[%s255] sm:$0x3] %vm254, %v253
    %s257 = scalar_lea.vmem %s0, 52
    %v258 = vld [vmem:[%s257] sm:$0x1]
    %s259 = scalar_lea.vmem %s0, 115
    %v260 = vld [vmem:[%s259] sm:$0x2]
    %vm261 = vcmask 1041409
    %v262 = vsel %vm261, %v260, %v258
    %263 = vrot.lane.b32.xlu0 %v262, 84
    %v264 = vpop.permute.xlu0 %263
    %vm265 = vcmask 761504
    %s266 = scalar_lea.vmem [#allocation0], 24
    %267 = vst.msk [vmem:[%s266] sm:$0x3] %vm265, %v264
    %s268 = scalar_lea.vmem %s0, 9
    %v269 = vld [vmem:[%s268] sm:$0x1]
    %s270 = scalar_lea.vmem %s0, 72
    %v271 = vld [vmem:[%s270] sm:$0x2]
    %vm272 = vcmask 1041409
    %v273 = vsel %vm272, %v271, %v269
    %274 = vrot.lane.b32.xlu0 %v273, 81
    %v275 = vpop.permute.xlu0 %274
    %vm276 = vcmask 736904
    %277 = vst.msk [vmem:[#allocation0] sm:$0x3] %vm276, %v275
    %s278 = scalar_lea.vmem %s0, 23
    %v279 = vld [vmem:[%s278] sm:$0x1]
    %s280 = scalar_lea.vmem %s0, 86
    %v281 = vld [vmem:[%s280] sm:$0x2]
    %vm282 = vcmask 1041409
    %v283 = vsel %vm282, %v281, %v279
    %284 = vrot.lane.b32.xlu0 %v283, 79
    %v285 = vpop.permute.xlu0 %284
    %vm286 = vcmask 720504
    %s287 = scalar_lea.vmem [#allocation0], 8
    %288 = vst.msk [vmem:[%s287] sm:$0x3] %vm286, %v285
    %s289 = scalar_lea.vmem %s0, 37
    %v290 = vld [vmem:[%s289] sm:$0x1]
    %s291 = scalar_lea.vmem %s0, 100
    %v292 = vld [vmem:[%s291] sm:$0x2]
    %vm293 = vcmask 1041409
    %v294 = vsel %vm293, %v292, %v290
    %295 = vrot.lane.b32.xlu0 %v294, 77
    %v296 = vpop.permute.xlu0 %295
    %vm297 = vcmask 704104
    %s298 = scalar_lea.vmem [#allocation0], 16
    %299 = vst.msk [vmem:[%s298] sm:$0x3] %vm297, %v296
    %s300 = scalar_lea.vmem %s0, 51
    %v301 = vld [vmem:[%s300] sm:$0x1]
    %s302 = scalar_lea.vmem %s0, 114
    %v303 = vld [vmem:[%s302] sm:$0x2]
    %vm304 = vcmask 1041409
    %v305 = vsel %vm304, %v303, %v301
    %306 = vrot.lane.b32.xlu0 %v305, 75
    %v307 = vpop.permute.xlu0 %306
    %vm308 = vcmask 687704
    %s309 = scalar_lea.vmem [#allocation0], 24
    %310 = vst.msk [vmem:[%s309] sm:$0x3] %vm308, %v307
    %s311 = scalar_lea.vmem %s0, 8
    %v312 = vld [vmem:[%s311] sm:$0x1]
    %s313 = scalar_lea.vmem %s0, 71
    %v314 = vld [vmem:[%s313] sm:$0x2]
    %vm315 = vcmask 1041409
    %v316 = vsel %vm315, %v314, %v312
    %317 = vrot.lane.b32.xlu0 %v316, 72
    %v318 = vpop.permute.xlu0 %317
    %vm319 = vcmask 663104
    %320 = vst.msk [vmem:[#allocation0] sm:$0x3] %vm319, %v318
    %s321 = scalar_lea.vmem %s0, 22
    %v322 = vld [vmem:[%s321] sm:$0x1]
    %s323 = scalar_lea.vmem %s0, 85
    %v324 = vld [vmem:[%s323] sm:$0x2]
    %vm325 = vcmask 1041409
    %v326 = vsel %vm325, %v324, %v322
    %327 = vrot.lane.b32.xlu0 %v326, 70
    %v328 = vpop.permute.xlu0 %327
    %vm329 = vcmask 646704
    %s330 = scalar_lea.vmem [#allocation0], 8
    %331 = vst.msk [vmem:[%s330] sm:$0x3] %vm329, %v328
    %s332 = scalar_lea.vmem %s0, 36
    %v333 = vld [vmem:[%s332] sm:$0x1]
    %s334 = scalar_lea.vmem %s0, 99
    %v335 = vld [vmem:[%s334] sm:$0x2]
    %vm336 = vcmask 1041409
    %v337 = vsel %vm336, %v335, %v333
    %338 = vrot.lane.b32.xlu0 %v337, 68
    %v339 = vpop.permute.xlu0 %338
    %vm340 = vcmask 630304
    %s341 = scalar_lea.vmem [#allocation0], 16
    %342 = vst.msk [vmem:[%s341] sm:$0x3] %vm340, %v339
    %s343 = scalar_lea.vmem %s0, 50
    %v344 = vld [vmem:[%s343] sm:$0x1]
    %s345 = scalar_lea.vmem %s0, 113
    %v346 = vld [vmem:[%s345] sm:$0x2]
    %vm347 = vcmask 1041409
    %v348 = vsel %vm347, %v346, %v344
    %349 = vrot.lane.b32.xlu0 %v348, 66
    %v350 = vpop.permute.xlu0 %349
    %vm351 = vcmask 613904
    %s352 = scalar_lea.vmem [#allocation0], 24
    %353 = vst.msk [vmem:[%s352] sm:$0x3] %vm351, %v350
    %s354 = scalar_lea.vmem %s0, 7
    %v355 = vld [vmem:[%s354] sm:$0x1]
    %s356 = scalar_lea.vmem %s0, 70
    %v357 = vld [vmem:[%s356] sm:$0x2]
    %vm358 = vcmask 1041409
    %v359 = vsel %vm358, %v357, %v355
    %360 = vrot.lane.b32.xlu0 %v359, 63
    %v361 = vpop.permute.xlu0 %360
    %vm362 = vcmask 589304
    %363 = vst.msk [vmem:[#allocation0] sm:$0x3] %vm362, %v361
    %s364 = scalar_lea.vmem %s0, 21
    %v365 = vld [vmem:[%s364] sm:$0x1]
    %s366 = scalar_lea.vmem %s0, 84
    %v367 = vld [vmem:[%s366] sm:$0x2]
    %vm368 = vcmask 1041409
    %v369 = vsel %vm368, %v367, %v365
    %370 = vrot.lane.b32.xlu0 %v369, 61
    %v371 = vpop.permute.xlu0 %370
    %vm372 = vcmask 572904
    %s373 = scalar_lea.vmem [#allocation0], 8
    %374 = vst.msk [vmem:[%s373] sm:$0x3] %vm372, %v371
    %s375 = scalar_lea.vmem %s0, 35
    %v376 = vld [vmem:[%s375] sm:$0x1]
    %s377 = scalar_lea.vmem %s0, 98
    %v378 = vld [vmem:[%s377] sm:$0x2]
    %vm379 = vcmask 1041409
    %v380 = vsel %vm379, %v378, %v376
    %381 = vrot.lane.b32.xlu0 %v380, 59
    %v382 = vpop.permute.xlu0 %381
    %vm383 = vcmask 556504
    %s384 = scalar_lea.vmem [#allocation0], 16
    %385 = vst.msk [vmem:[%s384] sm:$0x3] %vm383, %v382
    %s386 = scalar_lea.vmem %s0, 49
    %v387 = vld [vmem:[%s386] sm:$0x1]
    %s388 = scalar_lea.vmem %s0, 112
    %v389 = vld [vmem:[%s388] sm:$0x2]
    %vm390 = vcmask 1041409
    %v391 = vsel %vm390, %v389, %v387
    %392 = vrot.lane.b32.xlu0 %v391, 57
    %v393 = vpop.permute.xlu0 %392
    %vm394 = vcmask 540104
    %s395 = scalar_lea.vmem [#allocation0], 24
    %396 = vst.msk [vmem:[%s395] sm:$0x3] %vm394, %v393
    %s397 = scalar_lea.vmem %s0, 63
    %v398 = vld [vmem:[%s397] sm:$0x1]
    %s399 = scalar_lea.vmem %s0, 126
    %v400 = vld [vmem:[%s399] sm:$0x2]
    %vm401 = vcmask 1041409
    %v402 = vsel %vm401, %v400, %v398
    %403 = vrot.lane.b32.xlu0 %v402, 55
    %v404 = vpop.permute.xlu0 %403
    %vm405 = vcmask 523704
    %s406 = scalar_lea.vmem [#allocation0], 32
    %407 = vst.msk [vmem:[%s406] sm:$0x3] %vm405, %v404
    %s408 = scalar_lea.vmem %s0, 6
    %v409 = vld [vmem:[%s408] sm:$0x1]
    %s410 = scalar_lea.vmem %s0, 69
    %v411 = vld [vmem:[%s410] sm:$0x2]
    %vm412 = vcmask 1041409
    %v413 = vsel %vm412, %v411, %v409
    %414 = vrot.lane.b32.xlu0 %v413, 54
    %v415 = vpop.permute.xlu0 %414
    %vm416 = vcmask 515504
    %417 = vst.msk [vmem:[#allocation0] sm:$0x3] %vm416, %v415
    %s418 = scalar_lea.vmem %s0, 20
    %v419 = vld [vmem:[%s418] sm:$0x1]
    %s420 = scalar_lea.vmem %s0, 83
    %v421 = vld [vmem:[%s420] sm:$0x2]
    %vm422 = vcmask 1041409
    %v423 = vsel %vm422, %v421, %v419
    %424 = vrot.lane.b32.xlu0 %v423, 52
    %v425 = vpop.permute.xlu0 %424
    %vm426 = vcmask 499104
    %s427 = scalar_lea.vmem [#allocation0], 8
    %428 = vst.msk [vmem:[%s427] sm:$0x3] %vm426, %v425
    %s429 = scalar_lea.vmem %s0, 34
    %v430 = vld [vmem:[%s429] sm:$0x1]
    %s431 = scalar_lea.vmem %s0, 97
    %v432 = vld [vmem:[%s431] sm:$0x2]
    %vm433 = vcmask 1041409
    %v434 = vsel %vm433, %v432, %v430
    %435 = vrot.lane.b32.xlu0 %v434, 50
    %v436 = vpop.permute.xlu0 %435
    %vm437 = vcmask 482704
    %s438 = scalar_lea.vmem [#allocation0], 16
    %439 = vst.msk [vmem:[%s438] sm:$0x3] %vm437, %v436
    %s440 = scalar_lea.vmem %s0, 48
    %v441 = vld [vmem:[%s440] sm:$0x1]
    %s442 = scalar_lea.vmem %s0, 111
    %v443 = vld [vmem:[%s442] sm:$0x2]
    %vm444 = vcmask 1041409
    %v445 = vsel %vm444, %v443, %v441
    %446 = vrot.lane.b32.xlu0 %v445, 48
    %v447 = vpop.permute.xlu0 %446
    %vm448 = vcmask 466304
    %s449 = scalar_lea.vmem [#allocation0], 24
    %450 = vst.msk [vmem:[%s449] sm:$0x3] %vm448, %v447
    %s451 = scalar_lea.vmem %s0, 62
    %v452 = vld [vmem:[%s451] sm:$0x1]
    %s453 = scalar_lea.vmem %s0, 125
    %v454 = vld [vmem:[%s453] sm:$0x2]
    %vm455 = vcmask 1041409
    %v456 = vsel %vm455, %v454, %v452
    %457 = vrot.lane.b32.xlu0 %v456, 46
    %v458 = vpop.permute.xlu0 %457
    %vm459 = vcmask 449904
    %s460 = scalar_lea.vmem [#allocation0], 32
    %461 = vst.msk [vmem:[%s460] sm:$0x3] %vm459, %v458
    %s462 = scalar_lea.vmem %s0, 5
    %v463 = vld [vmem:[%s462] sm:$0x1]
    %s464 = scalar_lea.vmem %s0, 68
    %v465 = vld [vmem:[%s464] sm:$0x2]
    %vm466 = vcmask 1041409
    %v467 = vsel %vm466, %v465, %v463
    %468 = vrot.lane.b32.xlu0 %v467, 45
    %v469 = vpop.permute.xlu0 %468
    %vm470 = vcmask 441704
    %471 = vst.msk [vmem:[#allocation0] sm:$0x3] %vm470, %v469
    %s472 = scalar_lea.vmem %s0, 19
    %v473 = vld [vmem:[%s472] sm:$0x1]
    %s474 = scalar_lea.vmem %s0, 82
    %v475 = vld [vmem:[%s474] sm:$0x2]
    %vm476 = vcmask 1041409
    %v477 = vsel %vm476, %v475, %v473
    %478 = vrot.lane.b32.xlu0 %v477, 43
    %v479 = vpop.permute.xlu0 %478
    %vm480 = vcmask 425304
    %s481 = scalar_lea.vmem [#allocation0], 8
    %482 = vst.msk [vmem:[%s481] sm:$0x3] %vm480, %v479
    %s483 = scalar_lea.vmem %s0, 33
    %v484 = vld [vmem:[%s483] sm:$0x1]
    %s485 = scalar_lea.vmem %s0, 96
    %v486 = vld [vmem:[%s485] sm:$0x2]
    %vm487 = vcmask 1041409
    %v488 = vsel %vm487, %v486, %v484
    %489 = vrot.lane.b32.xlu0 %v488, 41
    %v490 = vpop.permute.xlu0 %489
    %vm491 = vcmask 408904
    %s492 = scalar_lea.vmem [#allocation0], 16
    %493 = vst.msk [vmem:[%s492] sm:$0x3] %vm491, %v490
    %s494 = scalar_lea.vmem %s0, 47
    %v495 = vld [vmem:[%s494] sm:$0x1]
    %s496 = scalar_lea.vmem %s0, 110
    %v497 = vld [vmem:[%s496] sm:$0x2]
    %vm498 = vcmask 1041409
    %v499 = vsel %vm498, %v497, %v495
    %500 = vrot.lane.b32.xlu0 %v499, 39
    %v501 = vpop.permute.xlu0 %500
    %vm502 = vcmask 392504
    %s503 = scalar_lea.vmem [#allocation0], 24
    %504 = vst.msk [vmem:[%s503] sm:$0x3] %vm502, %v501
    %s505 = scalar_lea.vmem %s0, 61
    %v506 = vld [vmem:[%s505] sm:$0x1]
    %s507 = scalar_lea.vmem %s0, 124
    %v508 = vld [vmem:[%s507] sm:$0x2]
    %vm509 = vcmask 1041409
    %v510 = vsel %vm509, %v508, %v506
    %511 = vrot.lane.b32.xlu0 %v510, 37
    %v512 = vpop.permute.xlu0 %511
    %vm513 = vcmask 376104
    %s514 = scalar_lea.vmem [#allocation0], 32
    %515 = vst.msk [vmem:[%s514] sm:$0x3] %vm513, %v512
    %s516 = scalar_lea.vmem %s0, 4
    %v517 = vld [vmem:[%s516] sm:$0x1]
    %s518 = scalar_lea.vmem %s0, 67
    %v519 = vld [vmem:[%s518] sm:$0x2]
    %vm520 = vcmask 1041409
    %v521 = vsel %vm520, %v519, %v517
    %522 = vrot.lane.b32.xlu0 %v521, 36
    %v523 = vpop.permute.xlu0 %522
    %vm524 = vcmask 367904
    %525 = vst.msk [vmem:[#allocation0] sm:$0x3] %vm524, %v523
    %s526 = scalar_lea.vmem %s0, 18
    %v527 = vld [vmem:[%s526] sm:$0x1]
    %s528 = scalar_lea.vmem %s0, 81
    %v529 = vld [vmem:[%s528] sm:$0x2]
    %vm530 = vcmask 1041409
    %v531 = vsel %vm530, %v529, %v527
    %532 = vrot.lane.b32.xlu0 %v531, 34
    %v533 = vpop.permute.xlu0 %532
    %vm534 = vcmask 351504
    %s535 = scalar_lea.vmem [#allocation0], 8
    %536 = vst.msk [vmem:[%s535] sm:$0x3] %vm534, %v533
    %s537 = scalar_lea.vmem %s0, 32
    %v538 = vld [vmem:[%s537] sm:$0x1]
    %s539 = scalar_lea.vmem %s0, 95
    %v540 = vld [vmem:[%s539] sm:$0x2]
    %vm541 = vcmask 1041409
    %v542 = vsel %vm541, %v540, %v538
    %543 = vrot.lane.b32.xlu0 %v542, 32
    %v544 = vpop.permute.xlu0 %543
    %vm545 = vcmask 335104
    %s546 = scalar_lea.vmem [#allocation0], 16
    %547 = vst.msk [vmem:[%s546] sm:$0x3] %vm545, %v544
    %s548 = scalar_lea.vmem %s0, 46
    %v549 = vld [vmem:[%s548] sm:$0x1]
    %s550 = scalar_lea.vmem %s0, 109
    %v551 = vld [vmem:[%s550] sm:$0x2]
    %vm552 = vcmask 1041409
    %v553 = vsel %vm552, %v551, %v549
    %554 = vrot.lane.b32.xlu0 %v553, 30
    %v555 = vpop.permute.xlu0 %554
    %vm556 = vcmask 318704
    %s557 = scalar_lea.vmem [#allocation0], 24
    %558 = vst.msk [vmem:[%s557] sm:$0x3] %vm556, %v555
    %s559 = scalar_lea.vmem %s0, 60
    %v560 = vld [vmem:[%s559] sm:$0x1]
    %s561 = scalar_lea.vmem %s0, 123
    %v562 = vld [vmem:[%s561] sm:$0x2]
    %vm563 = vcmask 1041409
    %v564 = vsel %vm563, %v562, %v560
    %565 = vrot.lane.b32.xlu0 %v564, 28
    %v566 = vpop.permute.xlu0 %565
    %vm567 = vcmask 302304
    %s568 = scalar_lea.vmem [#allocation0], 32
    %569 = vst.msk [vmem:[%s568] sm:$0x3] %vm567, %v566
    %s570 = scalar_lea.vmem %s0, 3
    %v571 = vld [vmem:[%s570] sm:$0x1]
    %s572 = scalar_lea.vmem %s0, 66
    %v573 = vld [vmem:[%s572] sm:$0x2]
    %vm574 = vcmask 1041409
    %v575 = vsel %vm574, %v573, %v571
    %576 = vrot.lane.b32.xlu0 %v575, 27
    %v577 = vpop.permute.xlu0 %576
    %vm578 = vcmask 294104
    %579 = vst.msk [vmem:[#allocation0] sm:$0x3] %vm578, %v577
    %s580 = scalar_lea.vmem %s0, 17
    %v581 = vld [vmem:[%s580] sm:$0x1]
    %s582 = scalar_lea.vmem %s0, 80
    %v583 = vld [vmem:[%s582] sm:$0x2]
    %vm584 = vcmask 1041409
    %v585 = vsel %vm584, %v583, %v581
    %586 = vrot.lane.b32.xlu0 %v585, 25
    %v587 = vpop.permute.xlu0 %586
    %vm588 = vcmask 277704
    %s589 = scalar_lea.vmem [#allocation0], 8
    %590 = vst.msk [vmem:[%s589] sm:$0x3] %vm588, %v587
    %s591 = scalar_lea.vmem %s0, 31
    %v592 = vld [vmem:[%s591] sm:$0x1]
    %s593 = scalar_lea.vmem %s0, 94
    %v594 = vld [vmem:[%s593] sm:$0x2]
    %vm595 = vcmask 1041409
    %v596 = vsel %vm595, %v594, %v592
    %597 = vrot.lane.b32.xlu0 %v596, 23
    %v598 = vpop.permute.xlu0 %597
    %vm599 = vcmask 261304
    %s600 = scalar_lea.vmem [#allocation0], 16
    %601 = vst.msk [vmem:[%s600] sm:$0x3] %vm599, %v598
    %s602 = scalar_lea.vmem %s0, 45
    %v603 = vld [vmem:[%s602] sm:$0x1]
    %s604 = scalar_lea.vmem %s0, 108
    %v605 = vld [vmem:[%s604] sm:$0x2]
    %vm606 = vcmask 1041409
    %v607 = vsel %vm606, %v605, %v603
    %608 = vrot.lane.b32.xlu0 %v607, 21
    %v609 = vpop.permute.xlu0 %608
    %vm610 = vcmask 244904
    %s611 = scalar_lea.vmem [#allocation0], 24
    %612 = vst.msk [vmem:[%s611] sm:$0x3] %vm610, %v609
    %s613 = scalar_lea.vmem %s0, 59
    %v614 = vld [vmem:[%s613] sm:$0x1]
    %s615 = scalar_lea.vmem %s0, 122
    %v616 = vld [vmem:[%s615] sm:$0x2]
    %vm617 = vcmask 1041409
    %v618 = vsel %vm617, %v616, %v614
    %619 = vrot.lane.b32.xlu0 %v618, 19
    %v620 = vpop.permute.xlu0 %619
    %vm621 = vcmask 228504
    %s622 = scalar_lea.vmem [#allocation0], 32
    %623 = vst.msk [vmem:[%s622] sm:$0x3] %vm621, %v620
    %s624 = scalar_lea.vmem %s0, 2
    %v625 = vld [vmem:[%s624] sm:$0x1]
    %s626 = scalar_lea.vmem %s0, 65
    %v627 = vld [vmem:[%s626] sm:$0x2]
    %vm628 = vcmask 1041409
    %v629 = vsel %vm628, %v627, %v625
    %630 = vrot.lane.b32.xlu0 %v629, 18
    %v631 = vpop.permute.xlu0 %630
    %vm632 = vcmask 220304
    %633 = vst.msk [vmem:[#allocation0] sm:$0x3] %vm632, %v631
    %s634 = scalar_lea.vmem %s0, 16
    %v635 = vld [vmem:[%s634] sm:$0x1]
    %s636 = scalar_lea.vmem %s0, 79
    %v637 = vld [vmem:[%s636] sm:$0x2]
    %vm638 = vcmask 1041409
    %v639 = vsel %vm638, %v637, %v635
    %640 = vrot.lane.b32.xlu0 %v639, 16
    %v641 = vpop.permute.xlu0 %640
    %vm642 = vcmask 203904
    %s643 = scalar_lea.vmem [#allocation0], 8
    %644 = vst.msk [vmem:[%s643] sm:$0x3] %vm642, %v641
    %s645 = scalar_lea.vmem %s0, 30
    %v646 = vld [vmem:[%s645] sm:$0x1]
    %s647 = scalar_lea.vmem %s0, 93
    %v648 = vld [vmem:[%s647] sm:$0x2]
    %vm649 = vcmask 1041409
    %v650 = vsel %vm649, %v648, %v646
    %651 = vrot.lane.b32.xlu0 %v650, 14
    %v652 = vpop.permute.xlu0 %651
    %vm653 = vcmask 187504
    %s654 = scalar_lea.vmem [#allocation0], 16
    %655 = vst.msk [vmem:[%s654] sm:$0x3] %vm653, %v652
    %s656 = scalar_lea.vmem %s0, 44
    %v657 = vld [vmem:[%s656] sm:$0x1]
    %s658 = scalar_lea.vmem %s0, 107
    %v659 = vld [vmem:[%s658] sm:$0x2]
    %vm660 = vcmask 1041409
    %v661 = vsel %vm660, %v659, %v657
    %662 = vrot.lane.b32.xlu0 %v661, 12
    %v663 = vpop.permute.xlu0 %662
    %vm664 = vcmask 171104
    %s665 = scalar_lea.vmem [#allocation0], 24
    %666 = vst.msk [vmem:[%s665] sm:$0x3] %vm664, %v663
    %s667 = scalar_lea.vmem %s0, 58
    %v668 = vld [vmem:[%s667] sm:$0x1]
    %s669 = scalar_lea.vmem %s0, 121
    %v670 = vld [vmem:[%s669] sm:$0x2]
    %vm671 = vcmask 1041409
    %v672 = vsel %vm671, %v670, %v668
    %673 = vrot.lane.b32.xlu0 %v672, 10
    %v674 = vpop.permute.xlu0 %673
    %vm675 = vcmask 154704
    %s676 = scalar_lea.vmem [#allocation0], 32
    %677 = vst.msk [vmem:[%s676] sm:$0x3] %vm675, %v674
    %s678 = scalar_lea.vmem %s0, 1
    %v679 = vld [vmem:[%s678] sm:$0x1]
    %s680 = scalar_lea.vmem %s0, 64
    %v681 = vld [vmem:[%s680] sm:$0x2]
    %vm682 = vcmask 1041409
    %v683 = vsel %vm682, %v681, %v679
    %684 = vrot.lane.b32.xlu0 %v683, 9
    %v685 = vpop.permute.xlu0 %684
    %vm686 = vcmask 146504
    %687 = vst.msk [vmem:[#allocation0] sm:$0x3] %vm686, %v685
    %s688 = scalar_lea.vmem %s0, 15
    %v689 = vld [vmem:[%s688] sm:$0x1]
    %s690 = scalar_lea.vmem %s0, 78
    %v691 = vld [vmem:[%s690] sm:$0x2]
    %vm692 = vcmask 1041409
    %v693 = vsel %vm692, %v691, %v689
    %694 = vrot.lane.b32.xlu0 %v693, 7
    %v695 = vpop.permute.xlu0 %694
    %vm696 = vcmask 130104
    %s697 = scalar_lea.vmem [#allocation0], 8
    %698 = vst.msk [vmem:[%s697] sm:$0x3] %vm696, %v695
    %s699 = scalar_lea.vmem %s0, 29
    %v700 = vld [vmem:[%s699] sm:$0x1]
    %s701 = scalar_lea.vmem %s0, 92
    %v702 = vld [vmem:[%s701] sm:$0x2]
    %vm703 = vcmask 1041409
    %v704 = vsel %vm703, %v702, %v700
    %705 = vrot.lane.b32.xlu0 %v704, 5
    %v706 = vpop.permute.xlu0 %705
    %vm707 = vcmask 113704
    %s708 = scalar_lea.vmem [#allocation0], 16
    %709 = vst.msk [vmem:[%s708] sm:$0x3] %vm707, %v706
    %s710 = scalar_lea.vmem %s0, 43
    %v711 = vld [vmem:[%s710] sm:$0x1]
    %s712 = scalar_lea.vmem %s0, 106
    %v713 = vld [vmem:[%s712] sm:$0x2]
    %vm714 = vcmask 1041409
    %v715 = vsel %vm714, %v713, %v711
    %716 = vrot.lane.b32.xlu0 %v715, 3
    %v717 = vpop.permute.xlu0 %716
    %vm718 = vcmask 97304
    %s719 = scalar_lea.vmem [#allocation0], 24
    %720 = vst.msk [vmem:[%s719] sm:$0x3] %vm718, %v717
    %s721 = scalar_lea.vmem %s0, 57
    %v722 = vld [vmem:[%s721] sm:$0x1]
    %s723 = scalar_lea.vmem %s0, 120
    %v724 = vld [vmem:[%s723] sm:$0x2]
    %vm725 = vcmask 1041409
    %v726 = vsel %vm725, %v724, %v722
    %727 = vrot.lane.b32.xlu0 %v726, 1
    %v728 = vpop.permute.xlu0 %727
    %vm729 = vcmask 80904
    %s730 = scalar_lea.vmem [#allocation0], 32
    %731 = vst.msk [vmem:[%s730] sm:$0x3] %vm729, %v728
    %s733 = sshll.u32 1, 2
    %s734 = ssub.s32 %s733, 1
    %v736 = vld [vmem:[#allocation0] sm:%s734]
    %s737 = sshll.u32 1, 2
    %s738 = ssub.s32 %s737, 1
    %739 = vst [vmem:[%s1] sm:%s738] %v736
    %s740 = scalar_lea.vmem [#allocation0], 8
    %v741 = vld [vmem:[%s740] sm:%s734]
    %s742 = sshll.u32 1, 2
    %s743 = ssub.s32 %s742, 1
    %s744 = scalar_lea.vmem %s1, 2
    %745 = vst [vmem:[%s744] sm:%s743] %v741
    %s746 = scalar_lea.vmem [#allocation0], 16
    %v747 = vld [vmem:[%s746] sm:%s734]
    %s748 = sshll.u32 1, 2
    %s749 = ssub.s32 %s748, 1
    %s750 = smul.addr 2, 2
    %s751 = scalar_lea.vmem %s1, %s750
    %752 = vst [vmem:[%s751] sm:%s749] %v747
    %s753 = scalar_lea.vmem [#allocation0], 24
    %v754 = vld [vmem:[%s753] sm:%s734]
    %s755 = sshll.u32 1, 2
    %s756 = ssub.s32 %s755, 1
    %s757 = smul.addr 2, 3
    %s758 = scalar_lea.vmem %s1, %s757
    %759 = vst [vmem:[%s758] sm:%s756] %v754
    %s760 = scalar_lea.vmem [#allocation0], 32
    %v761 = vld [vmem:[%s760] sm:%s734]
    %s762 = sshll.u32 1, 2
    %s763 = ssub.s32 %s762, 1
    %s764 = smul.addr 2, 4
    %s765 = scalar_lea.vmem %s1, %s764
    %766 = vst [vmem:[%s765] sm:%s763] %v761

// kernel: deform_block_forward.7
$region0: #{deform_block_forward.7}
  #allocation0 [shape = 'u32[]', space=smem, size = 0x4, offset = 0x4, fixed_abs, tag = 'smem constant byte address 0x4 - core index']
  #allocation1 [shape = 'u32[144,128]{1,0:T(1,128)}', space=vmem, size = 0x12000, scoped, tag = 'internal scratch']
  %s0 = inlined_call_operand.vmem [shape: bf16[128,36], index: 0, kind: input, shape index: {}]
  %s1 = inlined_call_operand.vmem [shape: bf16[36,16], index: 1, kind: input, shape index: {}]
  %s2 = inlined_call_operand.vmem [shape: f32[1,16], index: 2, kind: input, shape index: {}]
  %s3 = inlined_call_operand.vmem [shape: f32[1,16], index: 3, kind: input, shape index: {}]
  %s4 = inlined_call_operand.vmem [shape: f32[128,16], index: 4, kind: output, shape index: {}]
  %s5 = sld [smem:[#allocation0]]
  $region26: #{deform_block_forward.7} parent=0
    _
  %s7 = ssub.s32 1, %s5
  %s8 = scalar_select 0, %s7, %s5
  // Predicated region
  $region2: #{deform_block_forward.7} parent=0 // pred_check
    _
  $region3: #{deform_block_forward.7} parent=0 // pred_check_branch
    %10 = sbr.rel (0) target = $region5
  $region4: #{deform_block_forward.7} parent=0 // pred_region
    _
  $region5: #{deform_block_forward.7} parent=0 // pred_fallthru
    _
  // Predicated region
  $region6: #{deform_block_forward.7} parent=0 // pred_check
    _
  $region7: #{deform_block_forward.7} parent=0 // pred_check_branch
    %12 = sbr.rel (0) target = $region9
  $region8: #{deform_block_forward.7} parent=0 // pred_region
    _
  $region9: #{deform_block_forward.7} parent=0 // pred_fallthru
    _
  // Predicated region
  $region10: #{deform_block_forward.7} parent=0 // pred_check
    _
  $region11: #{deform_block_forward.7} parent=0 // pred_check_branch
    %14 = sbr.rel (0) target = $region13
  $region12: #{deform_block_forward.7} parent=0 // pred_region
    _
  $region13: #{deform_block_forward.7} parent=0 // pred_fallthru
    _
  // Predicated region
  $region14: #{deform_block_forward.7} parent=0 // pred_check
    _
  $region15: #{deform_block_forward.7} parent=0 // pred_check_branch
    %16 = sbr.rel (0) target = $region17
  $region16: #{deform_block_forward.7} parent=0 // pred_region
    _
  $region17: #{deform_block_forward.7} parent=0 // pred_fallthru
    _
  %v18 = vld [vmem:[%s0] sm:$0xf]
  %v19 = vld [vmem:[%s0 + $0x4] sm:$0xf]
  %v20 = vld [vmem:[%s0 + $0x8] sm:$0xf]
  %v21 = vld [vmem:[%s0 + $0xc] sm:$0xf]
  %v22 = vld [vmem:[%s0 + $0x10] sm:$0xf]
  %v23 = vld [vmem:[%s0 + $0x14] sm:$0xf]
  %v24 = vld [vmem:[%s0 + $0x18] sm:$0xf]
  %v25 = vld [vmem:[%s0 + $0x1c] sm:$0xf]
  %v26 = vld [vmem:[%s0 + $0x20] sm:$0xf]
  %v27 = vld [vmem:[%s0 + $0x24] sm:$0xf]
  %v28 = vld [vmem:[%s0 + $0x28] sm:$0xf]
  %v29 = vld [vmem:[%s0 + $0x2c] sm:$0xf]
  %v30 = vld [vmem:[%s0 + $0x30] sm:$0xf]
  %v31 = vld [vmem:[%s0 + $0x34] sm:$0xf]
  %v32 = vld [vmem:[%s0 + $0x38] sm:$0xf]
  %v33 = vld [vmem:[%s0 + $0x3c] sm:$0xf]
  %v34 = vld [vmem:[%s1] sm:$0xf]
  %v35 = vld [vmem:[%s1 + $0x4] sm:$0xf]
  %v36 = vld [vmem:[%s1 + $0x8] sm:$0xf]
  %v37 = vld [vmem:[%s1 + $0xc] sm:$0xf]
  %v38 = vld [vmem:[%s1 + $0x10] sm:$0x3]
  %v55 = vunpack.c.l.b16 %v18
  %v56 = vunpack.c.l.b16 %v19
  %v57 = vunpack.c.l.b16 %v20
  %v58 = vunpack.c.l.b16 %v21
  %v59 = vunpack.c.l.b16 %v22
  %v60 = vunpack.c.l.b16 %v23
  %v61 = vunpack.c.l.b16 %v24
  %v62 = vunpack.c.l.b16 %v25
  %v63 = vunpack.c.l.b16 %v26
  %v64 = vunpack.c.l.b16 %v27
  %v65 = vunpack.c.l.b16 %v28
  %v66 = vunpack.c.l.b16 %v29
  %v67 = vunpack.c.l.b16 %v30
  %v68 = vunpack.c.l.b16 %v31
  %v69 = vunpack.c.l.b16 %v32
  %v70 = vunpack.c.l.b16 %v33
  %v71 = vpack.c.b16 %v56, %v55
  %v72 = vpack.c.b16 %v58, %v57
  %v73 = vpack.c.b16 %v60, %v59
  %v74 = vpack.c.b16 %v62, %v61
  %v75 = vpack.c.b16 %v64, %v63
  %v76 = vpack.c.b16 %v66, %v65
  %v77 = vpack.c.b16 %v68, %v67
  %v78 = vpack.c.b16 %v70, %v69
  %v84 = vunpack.c.l.b16 %v34
  %v85 = vunpack.c.l.b16 %v35
  %v86 = vunpack.c.l.b16 %v36
  %v87 = vunpack.c.l.b16 %v37
  %v88 = vunpack.c.l.b16 %v38
  %v89 = vpack.c.b16 %v85, %v84
  %v90 = vpack.c.b16 %v87, %v86
  %v91 = vpack.c.b16 %v88, %v88
  %vm94 = vcmask 293888
  %v96 = vsel %vm94, %v71, 0
  %v99 = vsel %vm94, %v72, 0
  %v102 = vsel %vm94, %v73, 0
  %v105 = vsel %vm94, %v74, 0
  %v108 = vsel %vm94, %v75, 0
  %v111 = vsel %vm94, %v76, 0
  %v114 = vsel %vm94, %v77, 0
  %v117 = vsel %vm94, %v78, 0
  %vm119 = vcmask 1041408
  %v121 = vsel %vm119, %v91, 0
  %123 = vmatprep.subr.bf16.mxu0 0
  %124 = vmatpush1.bf16.msra.mxu0 0
  %125 = vmatprep.subr.bf16.mxu0 0
  %126 = vmatpush1.bf16.msra.mxu0 0
  %127 = vmatprep.subr.bf16.mxu0 0
  %128 = vmatpush1.bf16.msra.mxu0 0
  %129 = vmatprep.subr.bf16.mxu0 0
  %130 = vmatpush1.bf16.msra.mxu0 0
  %131 = vmatprep.subr.bf16.mxu0 0
  %132 = vmatpush1.bf16.msra.mxu0 0
  %133 = vmatprep.subr.bf16.mxu0 0
  %134 = vmatpush1.bf16.msra.mxu0 %v121
  %135 = vmatprep.subr.bf16.mxu0 0
  %136 = vmatpush1.bf16.msra.mxu0 %v90
  %137 = vmatprep.subr.bf16.mxu0 0
  %138 = vmatpush1.bf16.msra.mxu0 %v89
  %139 = vmatprep.subr.bf16.mxu0 0
  %140 = vmatpush2.bf16.msra.mxu0 0
  %141 = vmatprep.subr.bf16.mxu0 0
  %142 = vmatpush2.bf16.msra.mxu0 0
  %143 = vmatprep.subr.bf16.mxu0 0
  %144 = vmatpush2.bf16.msra.mxu0 0
  %145 = vmatprep.subr.bf16.mxu0 0
  %146 = vmatpush2.bf16.msra.mxu0 0
  %147 = vmatprep.subr.bf16.mxu0 0
  %148 = vmatpush2.bf16.msra.mxu0 0
  %149 = vmatprep.subr.bf16.mxu0 0
  %150 = vmatpush2.bf16.msra.mxu0 0
  %151 = vmatprep.subr.bf16.mxu0 0
  %152 = vmatpush2.bf16.msra.mxu0 0
  %153 = vmatprep.subr.bf16.mxu0 0
  %154 = vmatpush2.bf16.msra.mxu0 0
  %155 = vmatprep.mubr.bf16.mxu0 0
  %156 = vmatmul.mubr.bf16.gmra.mxu0 %v96
  %v157 = vpop.f32.mrf.mxu0
  %v158 = vadd.f32 0.0, %v157
  %v159 = vpop.f32.mrf.mxu0
  %v160 = vpop.f32.mrf.mxu0
  %v161 = vadd.f32 0.0, %v160
  %v162 = vpop.f32.mrf.mxu0
  %163 = vmatprep.mubr.bf16.mxu0 0
  %164 = vmatmul.mubr.bf16.gmra.mxu0 %v99
  %v165 = vpop.f32.mrf.mxu0
  %v166 = vadd.f32 0.0, %v165
  %v167 = vpop.f32.mrf.mxu0
  %v168 = vpop.f32.mrf.mxu0
  %v169 = vadd.f32 0.0, %v168
  %v170 = vpop.f32.mrf.mxu0
  %171 = vmatprep.mubr.bf16.mxu0 0
  %172 = vmatmul.mubr.bf16.gmra.mxu0 %v102
  %v173 = vpop.f32.mrf.mxu0
  %v174 = vadd.f32 0.0, %v173
  %v175 = vpop.f32.mrf.mxu0
  %v176 = vpop.f32.mrf.mxu0
  %v177 = vadd.f32 0.0, %v176
  %v178 = vpop.f32.mrf.mxu0
  %179 = vmatprep.mubr.bf16.mxu0 0
  %180 = vmatmul.mubr.bf16.gmra.mxu0 %v105
  %v181 = vpop.f32.mrf.mxu0
  %v182 = vadd.f32 0.0, %v181
  %v183 = vpop.f32.mrf.mxu0
  %v184 = vpop.f32.mrf.mxu0
  %v185 = vadd.f32 0.0, %v184
  %v186 = vpop.f32.mrf.mxu0
  %187 = vmatprep.mubr.bf16.mxu0 0
  %188 = vmatmul.mubr.bf16.gmra.mxu0 %v108
  %v189 = vpop.f32.mrf.mxu0
  %v190 = vadd.f32 0.0, %v189
  %v191 = vpop.f32.mrf.mxu0
  %v192 = vpop.f32.mrf.mxu0
  %v193 = vadd.f32 0.0, %v192
  %v194 = vpop.f32.mrf.mxu0
  %195 = vmatprep.mubr.bf16.mxu0 0
  %196 = vmatmul.mubr.bf16.gmra.mxu0 %v111
  %v197 = vpop.f32.mrf.mxu0
  %v198 = vadd.f32 0.0, %v197
  %v199 = vpop.f32.mrf.mxu0
  %v200 = vpop.f32.mrf.mxu0
  %v201 = vadd.f32 0.0, %v200
  %v202 = vpop.f32.mrf.mxu0
  %203 = vmatprep.mubr.bf16.mxu0 0
  %204 = vmatmul.mubr.bf16.gmra.mxu0 %v114
  %v205 = vpop.f32.mrf.mxu0
  %v206 = vadd.f32 0.0, %v205
  %v207 = vpop.f32.mrf.mxu0
  %v208 = vpop.f32.mrf.mxu0
  %v209 = vadd.f32 0.0, %v208
  %v210 = vpop.f32.mrf.mxu0
  %211 = vmatprep.mubr.bf16.mxu0 0
  %212 = vmatmul.mubr.bf16.gmra.mxu0 %v117
  %v213 = vpop.f32.mrf.mxu0
  %v214 = vadd.f32 0.0, %v213
  %v215 = vpop.f32.mrf.mxu0
  %v216 = vpop.f32.mrf.mxu0
  %v217 = vadd.f32 0.0, %v216
  %v218 = vpop.f32.mrf.mxu0
  %219 = vdwg.mxu0
  %v220 = vld [vmem:[%s2] sm:$0x1]
  %v222 = vlaneseq
  %v223 = vshrl.u32 %v222, 7
  %v224 = vsub.s32 0, %v223
  %v225 = vrot.slane %v220, %v224
  %v227 = vmul.f32 %v158, %v225
  %v228 = vmul.f32 %v161, %v225
  %v229 = vmul.f32 %v166, %v225
  %v230 = vmul.f32 %v169, %v225
  %v231 = vmul.f32 %v174, %v225
  %v232 = vmul.f32 %v177, %v225
  %v233 = vmul.f32 %v182, %v225
  %v234 = vmul.f32 %v185, %v225
  %v235 = vmul.f32 %v190, %v225
  %v236 = vmul.f32 %v193, %v225
  %v237 = vmul.f32 %v198, %v225
  %v238 = vmul.f32 %v201, %v225
  %v239 = vmul.f32 %v206, %v225
  %v240 = vmul.f32 %v209, %v225
  %v241 = vmul.f32 %v214, %v225
  %v242 = vmul.f32 %v217, %v225
  %v243 = vld [vmem:[%s3] sm:$0x1]
  %v245 = vlaneseq
  %v246 = vshrl.u32 %v245, 7
  %v247 = vsub.s32 0, %v246
  %v248 = vrot.slane %v243, %v247
  %v250 = vadd.f32 %v227, %v248
  %v251 = vadd.f32 %v228, %v248
  %v252 = vadd.f32 %v229, %v248
  %v253 = vadd.f32 %v230, %v248
  %v254 = vadd.f32 %v231, %v248
  %v255 = vadd.f32 %v232, %v248
  %v256 = vadd.f32 %v233, %v248
  %v257 = vadd.f32 %v234, %v248
  %v258 = vadd.f32 %v235, %v248
  %v259 = vadd.f32 %v236, %v248
  %v260 = vadd.f32 %v237, %v248
  %v261 = vadd.f32 %v238, %v248
  %v262 = vadd.f32 %v239, %v248
  %v263 = vadd.f32 %v240, %v248
  %v264 = vadd.f32 %v241, %v248
  %v265 = vadd.f32 %v242, %v248
  %vm266 = vcmask 130048
  %267 = vst.msk [vmem:[%s4] sm:$0xff] %vm266, %v250
  %268 = vst.msk [vmem:[%s4 + $0x8] sm:$0xff] %vm266, %v251
  %269 = vst.msk [vmem:[%s4 + $0x10] sm:$0xff] %vm266, %v252
  %270 = vst.msk [vmem:[%s4 + $0x18] sm:$0xff] %vm266, %v253
  %271 = vst.msk [vmem:[%s4 + $0x20] sm:$0xff] %vm266, %v254
  %272 = vst.msk [vmem:[%s4 + $0x28] sm:$0xff] %vm266, %v255
  %273 = vst.msk [vmem:[%s4 + $0x30] sm:$0xff] %vm266, %v256
  %274 = vst.msk [vmem:[%s4 + $0x38] sm:$0xff] %vm266, %v257
  %275 = vst.msk [vmem:[%s4 + $0x40] sm:$0xff] %vm266, %v258
  %276 = vst.msk [vmem:[%s4 + $0x48] sm:$0xff] %vm266, %v259
  %277 = vst.msk [vmem:[%s4 + $0x50] sm:$0xff] %vm266, %v260
  %278 = vst.msk [vmem:[%s4 + $0x58] sm:$0xff] %vm266, %v261
  %279 = vst.msk [vmem:[%s4 + $0x60] sm:$0xff] %vm266, %v262
  %280 = vst.msk [vmem:[%s4 + $0x68] sm:$0xff] %vm266, %v263
  %281 = vst.msk [vmem:[%s4 + $0x70] sm:$0xff] %vm266, %v264
  %282 = vst.msk [vmem:[%s4 + $0x78] sm:$0xff] %vm266, %v265
  // Predicated region
  $region18: #{deform_block_forward.7} parent=0 // pred_check
    _
  $region19: #{deform_block_forward.7} parent=0 // pred_check_branch
    %284 = sbr.rel (0) target = $region21
  $region20: #{deform_block_forward.7} parent=0 // pred_region
    _
  $region21: #{deform_block_forward.7} parent=0 // pred_fallthru
    _
  // Predicated region
  $region22: #{deform_block_forward.7} parent=0 // pred_check
    _
  $region23: #{deform_block_forward.7} parent=0 // pred_check_branch
    %286 = sbr.rel (0) target = $region25
  $region24: #{deform_block_forward.7} parent=0 // pred_region
    _
  $region25: #{deform_block_forward.7} parent=0 // pred_fallthru
    _

// kernel: deform_block_forward.9
$region0: #{deform_block_forward.9}
  #allocation0 [shape = 'u32[]', space=smem, size = 0x4, offset = 0x4, fixed_abs, tag = 'smem constant byte address 0x4 - core index']
  #allocation1 [shape = 'u32[144,128]{1,0:T(1,128)}', space=vmem, size = 0x12000, scoped, tag = 'internal scratch']
  %s0 = inlined_call_operand.vmem [shape: bf16[128,36], index: 0, kind: input, shape index: {}]
  %s1 = inlined_call_operand.vmem [shape: bf16[36,16], index: 1, kind: input, shape index: {}]
  %s2 = inlined_call_operand.vmem [shape: f32[1,16], index: 2, kind: input, shape index: {}]
  %s3 = inlined_call_operand.vmem [shape: f32[1,16], index: 3, kind: input, shape index: {}]
  %s4 = inlined_call_operand.vmem [shape: f32[128,16], index: 4, kind: output, shape index: {}]
  %s5 = sld [smem:[#allocation0]]
  $region26: #{deform_block_forward.9} parent=0
    _
  %s7 = ssub.s32 1, %s5
  %s8 = scalar_select 0, %s7, %s5
  // Predicated region
  $region2: #{deform_block_forward.9} parent=0 // pred_check
    _
  $region3: #{deform_block_forward.9} parent=0 // pred_check_branch
    %10 = sbr.rel (0) target = $region5
  $region4: #{deform_block_forward.9} parent=0 // pred_region
    _
  $region5: #{deform_block_forward.9} parent=0 // pred_fallthru
    _
  // Predicated region
  $region6: #{deform_block_forward.9} parent=0 // pred_check
    _
  $region7: #{deform_block_forward.9} parent=0 // pred_check_branch
    %12 = sbr.rel (0) target = $region9
  $region8: #{deform_block_forward.9} parent=0 // pred_region
    _
  $region9: #{deform_block_forward.9} parent=0 // pred_fallthru
    _
  // Predicated region
  $region10: #{deform_block_forward.9} parent=0 // pred_check
    _
  $region11: #{deform_block_forward.9} parent=0 // pred_check_branch
    %14 = sbr.rel (0) target = $region13
  $region12: #{deform_block_forward.9} parent=0 // pred_region
    _
  $region13: #{deform_block_forward.9} parent=0 // pred_fallthru
    _
  // Predicated region
  $region14: #{deform_block_forward.9} parent=0 // pred_check
    _
  $region15: #{deform_block_forward.9} parent=0 // pred_check_branch
    %16 = sbr.rel (0) target = $region17
  $region16: #{deform_block_forward.9} parent=0 // pred_region
    _
  $region17: #{deform_block_forward.9} parent=0 // pred_fallthru
    _
  %v18 = vld [vmem:[%s0] sm:$0xf]
  %v19 = vld [vmem:[%s0 + $0x4] sm:$0xf]
  %v20 = vld [vmem:[%s0 + $0x8] sm:$0xf]
  %v21 = vld [vmem:[%s0 + $0xc] sm:$0xf]
  %v22 = vld [vmem:[%s0 + $0x10] sm:$0xf]
  %v23 = vld [vmem:[%s0 + $0x14] sm:$0xf]
  %v24 = vld [vmem:[%s0 + $0x18] sm:$0xf]
  %v25 = vld [vmem:[%s0 + $0x1c] sm:$0xf]
  %v26 = vld [vmem:[%s0 + $0x20] sm:$0xf]
  %v27 = vld [vmem:[%s0 + $0x24] sm:$0xf]
  %v28 = vld [vmem:[%s0 + $0x28] sm:$0xf]
  %v29 = vld [vmem:[%s0 + $0x2c] sm:$0xf]
  %v30 = vld [vmem:[%s0 + $0x30] sm:$0xf]
  %v31 = vld [vmem:[%s0 + $0x34] sm:$0xf]
  %v32 = vld [vmem:[%s0 + $0x38] sm:$0xf]
  %v33 = vld [vmem:[%s0 + $0x3c] sm:$0xf]
  %v34 = vld [vmem:[%s1] sm:$0xf]
  %v35 = vld [vmem:[%s1 + $0x4] sm:$0xf]
  %v36 = vld [vmem:[%s1 + $0x8] sm:$0xf]
  %v37 = vld [vmem:[%s1 + $0xc] sm:$0xf]
  %v38 = vld [vmem:[%s1 + $0x10] sm:$0x3]
  %v55 = vunpack.c.l.b16 %v18
  %v56 = vunpack.c.l.b16 %v19
  %v57 = vunpack.c.l.b16 %v20
  %v58 = vunpack.c.l.b16 %v21
  %v59 = vunpack.c.l.b16 %v22
  %v60 = vunpack.c.l.b16 %v23
  %v61 = vunpack.c.l.b16 %v24
  %v62 = vunpack.c.l.b16 %v25
  %v63 = vunpack.c.l.b16 %v26
  %v64 = vunpack.c.l.b16 %v27
  %v65 = vunpack.c.l.b16 %v28
  %v66 = vunpack.c.l.b16 %v29
  %v67 = vunpack.c.l.b16 %v30
  %v68 = vunpack.c.l.b16 %v31
  %v69 = vunpack.c.l.b16 %v32
  %v70 = vunpack.c.l.b16 %v33
  %v71 = vpack.c.b16 %v56, %v55
  %v72 = vpack.c.b16 %v58, %v57
  %v73 = vpack.c.b16 %v60, %v59
  %v74 = vpack.c.b16 %v62, %v61
  %v75 = vpack.c.b16 %v64, %v63
  %v76 = vpack.c.b16 %v66, %v65
  %v77 = vpack.c.b16 %v68, %v67
  %v78 = vpack.c.b16 %v70, %v69
  %v84 = vunpack.c.l.b16 %v34
  %v85 = vunpack.c.l.b16 %v35
  %v86 = vunpack.c.l.b16 %v36
  %v87 = vunpack.c.l.b16 %v37
  %v88 = vunpack.c.l.b16 %v38
  %v89 = vpack.c.b16 %v85, %v84
  %v90 = vpack.c.b16 %v87, %v86
  %v91 = vpack.c.b16 %v88, %v88
  %vm94 = vcmask 293888
  %v96 = vsel %vm94, %v71, 0
  %v99 = vsel %vm94, %v72, 0
  %v102 = vsel %vm94, %v73, 0
  %v105 = vsel %vm94, %v74, 0
  %v108 = vsel %vm94, %v75, 0
  %v111 = vsel %vm94, %v76, 0
  %v114 = vsel %vm94, %v77, 0
  %v117 = vsel %vm94, %v78, 0
  %vm119 = vcmask 1041408
  %v121 = vsel %vm119, %v91, 0
  %123 = vmatprep.subr.bf16.mxu0 0
  %124 = vmatpush1.bf16.msra.mxu0 0
  %125 = vmatprep.subr.bf16.mxu0 0
  %126 = vmatpush1.bf16.msra.mxu0 0
  %127 = vmatprep.subr.bf16.mxu0 0
  %128 = vmatpush1.bf16.msra.mxu0 0
  %129 = vmatprep.subr.bf16.mxu0 0
  %130 = vmatpush1.bf16.msra.mxu0 0
  %131 = vmatprep.subr.bf16.mxu0 0
  %132 = vmatpush1.bf16.msra.mxu0 0
  %133 = vmatprep.subr.bf16.mxu0 0
  %134 = vmatpush1.bf16.msra.mxu0 %v121
  %135 = vmatprep.subr.bf16.mxu0 0
  %136 = vmatpush1.bf16.msra.mxu0 %v90
  %137 = vmatprep.subr.bf16.mxu0 0
  %138 = vmatpush1.bf16.msra.mxu0 %v89
  %139 = vmatprep.subr.bf16.mxu0 0
  %140 = vmatpush2.bf16.msra.mxu0 0
  %141 = vmatprep.subr.bf16.mxu0 0
  %142 = vmatpush2.bf16.msra.mxu0 0
  %143 = vmatprep.subr.bf16.mxu0 0
  %144 = vmatpush2.bf16.msra.mxu0 0
  %145 = vmatprep.subr.bf16.mxu0 0
  %146 = vmatpush2.bf16.msra.mxu0 0
  %147 = vmatprep.subr.bf16.mxu0 0
  %148 = vmatpush2.bf16.msra.mxu0 0
  %149 = vmatprep.subr.bf16.mxu0 0
  %150 = vmatpush2.bf16.msra.mxu0 0
  %151 = vmatprep.subr.bf16.mxu0 0
  %152 = vmatpush2.bf16.msra.mxu0 0
  %153 = vmatprep.subr.bf16.mxu0 0
  %154 = vmatpush2.bf16.msra.mxu0 0
  %155 = vmatprep.mubr.bf16.mxu0 0
  %156 = vmatmul.mubr.bf16.gmra.mxu0 %v96
  %v157 = vpop.f32.mrf.mxu0
  %v158 = vadd.f32 0.0, %v157
  %v159 = vpop.f32.mrf.mxu0
  %v160 = vpop.f32.mrf.mxu0
  %v161 = vadd.f32 0.0, %v160
  %v162 = vpop.f32.mrf.mxu0
  %163 = vmatprep.mubr.bf16.mxu0 0
  %164 = vmatmul.mubr.bf16.gmra.mxu0 %v99
  %v165 = vpop.f32.mrf.mxu0
  %v166 = vadd.f32 0.0, %v165
  %v167 = vpop.f32.mrf.mxu0
  %v168 = vpop.f32.mrf.mxu0
  %v169 = vadd.f32 0.0, %v168
  %v170 = vpop.f32.mrf.mxu0
  %171 = vmatprep.mubr.bf16.mxu0 0
  %172 = vmatmul.mubr.bf16.gmra.mxu0 %v102
  %v173 = vpop.f32.mrf.mxu0
  %v174 = vadd.f32 0.0, %v173
  %v175 = vpop.f32.mrf.mxu0
  %v176 = vpop.f32.mrf.mxu0
  %v177 = vadd.f32 0.0, %v176
  %v178 = vpop.f32.mrf.mxu0
  %179 = vmatprep.mubr.bf16.mxu0 0
  %180 = vmatmul.mubr.bf16.gmra.mxu0 %v105
  %v181 = vpop.f32.mrf.mxu0
  %v182 = vadd.f32 0.0, %v181
  %v183 = vpop.f32.mrf.mxu0
  %v184 = vpop.f32.mrf.mxu0
  %v185 = vadd.f32 0.0, %v184
  %v186 = vpop.f32.mrf.mxu0
  %187 = vmatprep.mubr.bf16.mxu0 0
  %188 = vmatmul.mubr.bf16.gmra.mxu0 %v108
  %v189 = vpop.f32.mrf.mxu0
  %v190 = vadd.f32 0.0, %v189
  %v191 = vpop.f32.mrf.mxu0
  %v192 = vpop.f32.mrf.mxu0
  %v193 = vadd.f32 0.0, %v192
  %v194 = vpop.f32.mrf.mxu0
  %195 = vmatprep.mubr.bf16.mxu0 0
  %196 = vmatmul.mubr.bf16.gmra.mxu0 %v111
  %v197 = vpop.f32.mrf.mxu0
  %v198 = vadd.f32 0.0, %v197
  %v199 = vpop.f32.mrf.mxu0
  %v200 = vpop.f32.mrf.mxu0
  %v201 = vadd.f32 0.0, %v200
  %v202 = vpop.f32.mrf.mxu0
  %203 = vmatprep.mubr.bf16.mxu0 0
  %204 = vmatmul.mubr.bf16.gmra.mxu0 %v114
  %v205 = vpop.f32.mrf.mxu0
  %v206 = vadd.f32 0.0, %v205
  %v207 = vpop.f32.mrf.mxu0
  %v208 = vpop.f32.mrf.mxu0
  %v209 = vadd.f32 0.0, %v208
  %v210 = vpop.f32.mrf.mxu0
  %211 = vmatprep.mubr.bf16.mxu0 0
  %212 = vmatmul.mubr.bf16.gmra.mxu0 %v117
  %v213 = vpop.f32.mrf.mxu0
  %v214 = vadd.f32 0.0, %v213
  %v215 = vpop.f32.mrf.mxu0
  %v216 = vpop.f32.mrf.mxu0
  %v217 = vadd.f32 0.0, %v216
  %v218 = vpop.f32.mrf.mxu0
  %219 = vdwg.mxu0
  %v220 = vld [vmem:[%s2] sm:$0x1]
  %v222 = vlaneseq
  %v223 = vshrl.u32 %v222, 7
  %v224 = vsub.s32 0, %v223
  %v225 = vrot.slane %v220, %v224
  %v227 = vmul.f32 %v158, %v225
  %v228 = vmul.f32 %v161, %v225
  %v229 = vmul.f32 %v166, %v225
  %v230 = vmul.f32 %v169, %v225
  %v231 = vmul.f32 %v174, %v225
  %v232 = vmul.f32 %v177, %v225
  %v233 = vmul.f32 %v182, %v225
  %v234 = vmul.f32 %v185, %v225
  %v235 = vmul.f32 %v190, %v225
  %v236 = vmul.f32 %v193, %v225
  %v237 = vmul.f32 %v198, %v225
  %v238 = vmul.f32 %v201, %v225
  %v239 = vmul.f32 %v206, %v225
  %v240 = vmul.f32 %v209, %v225
  %v241 = vmul.f32 %v214, %v225
  %v242 = vmul.f32 %v217, %v225
  %v243 = vld [vmem:[%s3] sm:$0x1]
  %v245 = vlaneseq
  %v246 = vshrl.u32 %v245, 7
  %v247 = vsub.s32 0, %v246
  %v248 = vrot.slane %v243, %v247
  %v250 = vadd.f32 %v227, %v248
  %v251 = vadd.f32 %v228, %v248
  %v252 = vadd.f32 %v229, %v248
  %v253 = vadd.f32 %v230, %v248
  %v254 = vadd.f32 %v231, %v248
  %v255 = vadd.f32 %v232, %v248
  %v256 = vadd.f32 %v233, %v248
  %v257 = vadd.f32 %v234, %v248
  %v258 = vadd.f32 %v235, %v248
  %v259 = vadd.f32 %v236, %v248
  %v260 = vadd.f32 %v237, %v248
  %v261 = vadd.f32 %v238, %v248
  %v262 = vadd.f32 %v239, %v248
  %v263 = vadd.f32 %v240, %v248
  %v264 = vadd.f32 %v241, %v248
  %v265 = vadd.f32 %v242, %v248
  %v266 = vmax.f32 %v250, 0.0
  %v267 = vmax.f32 %v251, 0.0
  %v268 = vmax.f32 %v252, 0.0
  %v269 = vmax.f32 %v253, 0.0
  %v270 = vmax.f32 %v254, 0.0
  %v271 = vmax.f32 %v255, 0.0
  %v272 = vmax.f32 %v256, 0.0
  %v273 = vmax.f32 %v257, 0.0
  %v274 = vmax.f32 %v258, 0.0
  %v275 = vmax.f32 %v259, 0.0
  %v276 = vmax.f32 %v260, 0.0
  %v277 = vmax.f32 %v261, 0.0
  %v278 = vmax.f32 %v262, 0.0
  %v279 = vmax.f32 %v263, 0.0
  %v280 = vmax.f32 %v264, 0.0
  %v281 = vmax.f32 %v265, 0.0
  %vm282 = vcmask 130048
  %283 = vst.msk [vmem:[%s4] sm:$0xff] %vm282, %v266
  %284 = vst.msk [vmem:[%s4 + $0x8] sm:$0xff] %vm282, %v267
  %285 = vst.msk [vmem:[%s4 + $0x10] sm:$0xff] %vm282, %v268
  %286 = vst.msk [vmem:[%s4 + $0x18] sm:$0xff] %vm282, %v269
  %287 = vst.msk [vmem:[%s4 + $0x20] sm:$0xff] %vm282, %v270
  %288 = vst.msk [vmem:[%s4 + $0x28] sm:$0xff] %vm282, %v271
  %289 = vst.msk [vmem:[%s4 + $0x30] sm:$0xff] %vm282, %v272
  %290 = vst.msk [vmem:[%s4 + $0x38] sm:$0xff] %vm282, %v273
  %291 = vst.msk [vmem:[%s4 + $0x40] sm:$0xff] %vm282, %v274
  %292 = vst.msk [vmem:[%s4 + $0x48] sm:$0xff] %vm282, %v275
  %293 = vst.msk [vmem:[%s4 + $0x50] sm:$0xff] %vm282, %v276
  %294 = vst.msk [vmem:[%s4 + $0x58] sm:$0xff] %vm282, %v277
  %295 = vst.msk [vmem:[%s4 + $0x60] sm:$0xff] %vm282, %v278
  %296 = vst.msk [vmem:[%s4 + $0x68] sm:$0xff] %vm282, %v279
  %297 = vst.msk [vmem:[%s4 + $0x70] sm:$0xff] %vm282, %v280
  %298 = vst.msk [vmem:[%s4 + $0x78] sm:$0xff] %vm282, %v281
  // Predicated region
  $region18: #{deform_block_forward.9} parent=0 // pred_check
    _
  $region19: #{deform_block_forward.9} parent=0 // pred_check_branch
    %300 = sbr.rel (0) target = $region21
  $region20: #{deform_block_forward.9} parent=0 // pred_region
    _
  $region21: #{deform_block_forward.9} parent=0 // pred_fallthru
    _
  // Predicated region
  $region22: #{deform_block_forward.9} parent=0 // pred_check
    _
  $region23: #{deform_block_forward.9} parent=0 // pred_check_branch
    %302 = sbr.rel (0) target = $region25
  $region24: #{deform_block_forward.9} parent=0 // pred_region
    _
  $region25: #{deform_block_forward.9} parent=0 // pred_fallthru
    _

// kernel: deform_block_forward.10
$region0: #{deform_block_forward.10}
  #allocation0 [shape = 'u32[]', space=smem, size = 0x4, offset = 0x4, fixed_abs, tag = 'smem constant byte address 0x4 - core index']
  #allocation1 [shape = 'u32[144,128]{1,0:T(1,128)}', space=vmem, size = 0x12000, scoped, tag = 'internal scratch']
  %s0 = inlined_call_operand.vmem [shape: bf16[128,144], index: 0, kind: input, shape index: {}]
  %s1 = inlined_call_operand.vmem [shape: bf16[144,18], index: 1, kind: input, shape index: {}]
  %s2 = inlined_call_operand.vmem [shape: f32[1,18], index: 2, kind: input, shape index: {}]
  %s3 = inlined_call_operand.vmem [shape: f32[128,18], index: 3, kind: output, shape index: {}]
  %s4 = sld [smem:[#allocation0]]
  $region22: #{deform_block_forward.10} parent=0
    _
  %s6 = ssub.s32 1, %s4
  %s7 = scalar_select 0, %s6, %s4
  // Predicated region
  $region2: #{deform_block_forward.10} parent=0 // pred_check
    _
  $region3: #{deform_block_forward.10} parent=0 // pred_check_branch
    %9 = sbr.rel (0) target = $region5
  $region4: #{deform_block_forward.10} parent=0 // pred_region
    _
  $region5: #{deform_block_forward.10} parent=0 // pred_fallthru
    _
  // Predicated region
  $region6: #{deform_block_forward.10} parent=0 // pred_check
    _
  $region7: #{deform_block_forward.10} parent=0 // pred_check_branch
    %11 = sbr.rel (0) target = $region9
  $region8: #{deform_block_forward.10} parent=0 // pred_region
    _
  $region9: #{deform_block_forward.10} parent=0 // pred_fallthru
    _
  // Predicated region
  $region10: #{deform_block_forward.10} parent=0 // pred_check
    _
  $region11: #{deform_block_forward.10} parent=0 // pred_check_branch
    %13 = sbr.rel (0) target = $region13
  $region12: #{deform_block_forward.10} parent=0 // pred_region
    _
  $region13: #{deform_block_forward.10} parent=0 // pred_fallthru
    _
  %v15 = vld [vmem:[%s0] sm:$0xff]
  %v16 = vld [vmem:[%s0 + $0x8] sm:$0xff]
  %v17 = vld [vmem:[%s0 + $0x10] sm:$0xff]
  %v18 = vld [vmem:[%s0 + $0x18] sm:$0xff]
  %v19 = vld [vmem:[%s0 + $0x20] sm:$0xff]
  %v20 = vld [vmem:[%s0 + $0x28] sm:$0xff]
  %v21 = vld [vmem:[%s0 + $0x30] sm:$0xff]
  %v22 = vld [vmem:[%s0 + $0x38] sm:$0xff]
  %v23 = vld [vmem:[%s0 + $0x40] sm:$0xff]
  %v24 = vld [vmem:[%s0 + $0x48] sm:$0xff]
  %v25 = vld [vmem:[%s0 + $0x50] sm:$0xff]
  %v26 = vld [vmem:[%s0 + $0x58] sm:$0xff]
  %v27 = vld [vmem:[%s0 + $0x60] sm:$0xff]
  %v28 = vld [vmem:[%s0 + $0x68] sm:$0xff]
  %v29 = vld [vmem:[%s0 + $0x70] sm:$0xff]
  %v30 = vld [vmem:[%s0 + $0x78] sm:$0xff]
  %v31 = vld [vmem:[%s1] sm:$0xf]
  %v32 = vld [vmem:[%s1 + $0x4] sm:$0xf]
  %v33 = vld [vmem:[%s1 + $0x8] sm:$0xf]
  %v34 = vld [vmem:[%s1 + $0xc] sm:$0xf]
  %v35 = vld [vmem:[%s1 + $0x10] sm:$0xf]
  %v36 = vld [vmem:[%s1 + $0x14] sm:$0xf]
  %v37 = vld [vmem:[%s1 + $0x18] sm:$0xf]
  %v38 = vld [vmem:[%s1 + $0x1c] sm:$0xf]
  %v39 = vld [vmem:[%s1 + $0x20] sm:$0xf]
  %v40 = vld [vmem:[%s1 + $0x24] sm:$0xf]
  %v41 = vld [vmem:[%s1 + $0x28] sm:$0xf]
  %v42 = vld [vmem:[%s1 + $0x2c] sm:$0xf]
  %v43 = vld [vmem:[%s1 + $0x30] sm:$0xf]
  %v44 = vld [vmem:[%s1 + $0x34] sm:$0xf]
  %v45 = vld [vmem:[%s1 + $0x38] sm:$0xf]
  %v46 = vld [vmem:[%s1 + $0x3c] sm:$0xf]
  %v47 = vld [vmem:[%s1 + $0x40] sm:$0xf]
  %v48 = vld [vmem:[%s1 + $0x44] sm:$0xf]
  %v49 = vld [vmem:[%s2] sm:$0x1]
  %v51 = vlaneseq
  %v52 = vshrl.u32 %v51, 7
  %v53 = vsub.s32 0, %v52
  %v54 = vrot.slane %v49, %v53
  %v72 = vunpack.c.l.b16 %v15
  %v73 = vunpack.c.h.b16 %v15
  %v74 = vunpack.c.l.b16 %v16
  %v75 = vunpack.c.h.b16 %v16
  %v76 = vunpack.c.l.b16 %v17
  %v77 = vunpack.c.h.b16 %v17
  %v78 = vunpack.c.l.b16 %v18
  %v79 = vunpack.c.h.b16 %v18
  %v80 = vunpack.c.l.b16 %v19
  %v81 = vunpack.c.h.b16 %v19
  %v82 = vunpack.c.l.b16 %v20
  %v83 = vunpack.c.h.b16 %v20
  %v84 = vunpack.c.l.b16 %v21
  %v85 = vunpack.c.h.b16 %v21
  %v86 = vunpack.c.l.b16 %v22
  %v87 = vunpack.c.h.b16 %v22
  %v88 = vunpack.c.l.b16 %v23
  %v89 = vunpack.c.h.b16 %v23
  %v90 = vunpack.c.l.b16 %v24
  %v91 = vunpack.c.h.b16 %v24
  %v92 = vunpack.c.l.b16 %v25
  %v93 = vunpack.c.h.b16 %v25
  %v94 = vunpack.c.l.b16 %v26
  %v95 = vunpack.c.h.b16 %v26
  %v96 = vunpack.c.l.b16 %v27
  %v97 = vunpack.c.h.b16 %v27
  %v98 = vunpack.c.l.b16 %v28
  %v99 = vunpack.c.h.b16 %v28
  %v100 = vunpack.c.l.b16 %v29
  %v101 = vunpack.c.h.b16 %v29
  %v102 = vunpack.c.l.b16 %v30
  %v103 = vunpack.c.h.b16 %v30
  %v104 = vpack.c.b16 %v74, %v72
  %v105 = vpack.c.b16 %v75, %v73
  %v106 = vpack.c.b16 %v78, %v76
  %v107 = vpack.c.b16 %v79, %v77
  %v108 = vpack.c.b16 %v82, %v80
  %v109 = vpack.c.b16 %v83, %v81
  %v110 = vpack.c.b16 %v86, %v84
  %v111 = vpack.c.b16 %v87, %v85
  %v112 = vpack.c.b16 %v90, %v88
  %v113 = vpack.c.b16 %v91, %v89
  %v114 = vpack.c.b16 %v94, %v92
  %v115 = vpack.c.b16 %v95, %v93
  %v116 = vpack.c.b16 %v98, %v96
  %v117 = vpack.c.b16 %v99, %v97
  %v118 = vpack.c.b16 %v102, %v100
  %v119 = vpack.c.b16 %v103, %v101
  %v146 = vunpack.c.l.b16 %v31
  %v147 = vunpack.c.l.b16 %v32
  %v148 = vunpack.c.l.b16 %v33
  %v149 = vunpack.c.l.b16 %v34
  %v150 = vunpack.c.l.b16 %v35
  %v151 = vunpack.c.l.b16 %v36
  %v152 = vunpack.c.l.b16 %v37
  %v153 = vunpack.c.l.b16 %v38
  %v154 = vunpack.c.l.b16 %v39
  %v155 = vunpack.c.l.b16 %v40
  %v156 = vunpack.c.l.b16 %v41
  %v157 = vunpack.c.l.b16 %v42
  %v158 = vunpack.c.l.b16 %v43
  %v159 = vunpack.c.l.b16 %v44
  %v160 = vunpack.c.l.b16 %v45
  %v161 = vunpack.c.l.b16 %v46
  %v162 = vunpack.c.l.b16 %v47
  %v163 = vunpack.c.l.b16 %v48
  %v164 = vpack.c.b16 %v147, %v146
  %v165 = vpack.c.b16 %v149, %v148
  %v166 = vpack.c.b16 %v151, %v150
  %v167 = vpack.c.b16 %v153, %v152
  %v168 = vpack.c.b16 %v155, %v154
  %v169 = vpack.c.b16 %v157, %v156
  %v170 = vpack.c.b16 %v159, %v158
  %v171 = vpack.c.b16 %v161, %v160
  %v172 = vpack.c.b16 %v163, %v162
  %vm182 = vcmask 130048
  %v184 = vsel %vm182, %v105, 0
  %v187 = vsel %vm182, %v107, 0
  %v190 = vsel %vm182, %v109, 0
  %v193 = vsel %vm182, %v111, 0
  %v196 = vsel %vm182, %v113, 0
  %v199 = vsel %vm182, %v115, 0
  %v202 = vsel %vm182, %v117, 0
  %v205 = vsel %vm182, %v119, 0
  %207 = vmatprep.subr.bf16.mxu0 0
  %208 = vmatpush1.bf16.msra.mxu0 %v171
  %209 = vmatprep.subr.bf16.mxu0 0
  %210 = vmatpush1.bf16.msra.mxu0 %v170
  %211 = vmatprep.subr.bf16.mxu0 0
  %212 = vmatpush1.bf16.msra.mxu0 %v169
  %213 = vmatprep.subr.bf16.mxu0 0
  %214 = vmatpush1.bf16.msra.mxu0 %v168
  %215 = vmatprep.subr.bf16.mxu0 0
  %216 = vmatpush1.bf16.msra.mxu0 %v167
  %217 = vmatprep.subr.bf16.mxu0 0
  %218 = vmatpush1.bf16.msra.mxu0 %v166
  %219 = vmatprep.subr.bf16.mxu0 0
  %220 = vmatpush1.bf16.msra.mxu0 %v165
  %221 = vmatprep.subr.bf16.mxu0 0
  %222 = vmatpush1.bf16.msra.mxu0 %v164
  %223 = vmatprep.subr.bf16.mxu0 0
  %224 = vmatpush2.bf16.msra.mxu0 0
  %225 = vmatprep.subr.bf16.mxu0 0
  %226 = vmatpush2.bf16.msra.mxu0 0
  %227 = vmatprep.subr.bf16.mxu0 0
  %228 = vmatpush2.bf16.msra.mxu0 0
  %229 = vmatprep.subr.bf16.mxu0 0
  %230 = vmatpush2.bf16.msra.mxu0 0
  %231 = vmatprep.subr.bf16.mxu0 0
  %232 = vmatpush2.bf16.msra.mxu0 0
  %233 = vmatprep.subr.bf16.mxu0 0
  %234 = vmatpush2.bf16.msra.mxu0 0
  %235 = vmatprep.subr.bf16.mxu0 0
  %236 = vmatpush2.bf16.msra.mxu0 0
  %237 = vmatprep.subr.bf16.mxu0 0
  %238 = vmatpush2.bf16.msra.mxu0 %v172
  %239 = vmatprep.mubr.bf16.mxu0 %v184
  %240 = vmatmul.mubr.bf16.gmra.mxu0 %v104
  %v241 = vpop.f32.mrf.mxu0
  %v242 = vadd.f32 %v54, %v241
  %v243 = vpop.f32.mrf.mxu0
  %v244 = vpop.f32.mrf.mxu0
  %v245 = vadd.f32 %v54, %v244
  %v246 = vpop.f32.mrf.mxu0
  %247 = vmatprep.mubr.bf16.mxu0 %v187
  %248 = vmatmul.mubr.bf16.gmra.mxu0 %v106
  %v249 = vpop.f32.mrf.mxu0
  %v250 = vadd.f32 %v54, %v249
  %v251 = vpop.f32.mrf.mxu0
  %v252 = vpop.f32.mrf.mxu0
  %v253 = vadd.f32 %v54, %v252
  %v254 = vpop.f32.mrf.mxu0
  %255 = vmatprep.mubr.bf16.mxu0 %v190
  %256 = vmatmul.mubr.bf16.gmra.mxu0 %v108
  %v257 = vpop.f32.mrf.mxu0
  %v258 = vadd.f32 %v54, %v257
  %v259 = vpop.f32.mrf.mxu0
  %v260 = vpop.f32.mrf.mxu0
  %v261 = vadd.f32 %v54, %v260
  %v262 = vpop.f32.mrf.mxu0
  %263 = vmatprep.mubr.bf16.mxu0 %v193
  %264 = vmatmul.mubr.bf16.gmra.mxu0 %v110
  %v265 = vpop.f32.mrf.mxu0
  %v266 = vadd.f32 %v54, %v265
  %v267 = vpop.f32.mrf.mxu0
  %v268 = vpop.f32.mrf.mxu0
  %v269 = vadd.f32 %v54, %v268
  %v270 = vpop.f32.mrf.mxu0
  %271 = vmatprep.mubr.bf16.mxu0 %v196
  %272 = vmatmul.mubr.bf16.gmra.mxu0 %v112
  %v273 = vpop.f32.mrf.mxu0
  %v274 = vadd.f32 %v54, %v273
  %v275 = vpop.f32.mrf.mxu0
  %v276 = vpop.f32.mrf.mxu0
  %v277 = vadd.f32 %v54, %v276
  %v278 = vpop.f32.mrf.mxu0
  %279 = vmatprep.mubr.bf16.mxu0 %v199
  %280 = vmatmul.mubr.bf16.gmra.mxu0 %v114
  %v281 = vpop.f32.mrf.mxu0
  %v282 = vadd.f32 %v54, %v281
  %v283 = vpop.f32.mrf.mxu0
  %v284 = vpop.f32.mrf.mxu0
  %v285 = vadd.f32 %v54, %v284
  %v286 = vpop.f32.mrf.mxu0
  %287 = vmatprep.mubr.bf16.mxu0 %v202
  %288 = vmatmul.mubr.bf16.gmra.mxu0 %v116
  %v289 = vpop.f32.mrf.mxu0
  %v290 = vadd.f32 %v54, %v289
  %v291 = vpop.f32.mrf.mxu0
  %v292 = vpop.f32.mrf.mxu0
  %v293 = vadd.f32 %v54, %v292
  %v294 = vpop.f32.mrf.mxu0
  %295 = vmatprep.mubr.bf16.mxu0 %v205
  %296 = vmatmul.mubr.bf16.gmra.mxu0 %v118
  %v297 = vpop.f32.mrf.mxu0
  %v298 = vadd.f32 %v54, %v297
  %v299 = vpop.f32.mrf.mxu0
  %v300 = vpop.f32.mrf.mxu0
  %v301 = vadd.f32 %v54, %v300
  %v302 = vpop.f32.mrf.mxu0
  %303 = vdwg.mxu0
  %vm304 = vcmask 146432
  %305 = vst.msk [vmem:[%s3] sm:$0xff] %vm304, %v242
  %306 = vst.msk [vmem:[%s3 + $0x8] sm:$0xff] %vm304, %v245
  %307 = vst.msk [vmem:[%s3 + $0x10] sm:$0xff] %vm304, %v250
  %308 = vst.msk [vmem:[%s3 + $0x18] sm:$0xff] %vm304, %v253
  %309 = vst.msk [vmem:[%s3 + $0x20] sm:$0xff] %vm304, %v258
  %310 = vst.msk [vmem:[%s3 + $0x28] sm:$0xff] %vm304, %v261
  %311 = vst.msk [vmem:[%s3 + $0x30] sm:$0xff] %vm304, %v266
  %312 = vst.msk [vmem:[%s3 + $0x38] sm:$0xff] %vm304, %v269
  %313 = vst.msk [vmem:[%s3 + $0x40] sm:$0xff] %vm304, %v274
  %314 = vst.msk [vmem:[%s3 + $0x48] sm:$0xff] %vm304, %v277
  %315 = vst.msk [vmem:[%s3 + $0x50] sm:$0xff] %vm304, %v282
  %316 = vst.msk [vmem:[%s3 + $0x58] sm:$0xff] %vm304, %v285
  %317 = vst.msk [vmem:[%s3 + $0x60] sm:$0xff] %vm304, %v290
  %318 = vst.msk [vmem:[%s3 + $0x68] sm:$0xff] %vm304, %v293
  %319 = vst.msk [vmem:[%s3 + $0x70] sm:$0xff] %vm304, %v298
  %320 = vst.msk [vmem:[%s3 + $0x78] sm:$0xff] %vm304, %v301
  // Predicated region
  $region14: #{deform_block_forward.10} parent=0 // pred_check
    _
  $region15: #{deform_block_forward.10} parent=0 // pred_check_branch
    %322 = sbr.rel (0) target = $region17
  $region16: #{deform_block_forward.10} parent=0 // pred_region
    _
  $region17: #{deform_block_forward.10} parent=0 // pred_fallthru
    _
  // Predicated region
  $region18: #{deform_block_forward.10} parent=0 // pred_check
    _
  $region19: #{deform_block_forward.10} parent=0 // pred_check_branch
    %324 = sbr.rel (0) target = $region21
  $region20: #{deform_block_forward.10} parent=0 // pred_region
    _
  $region21: #{deform_block_forward.10} parent=0 // pred_fallthru
    _

// kernel: deform_block_forward.11
$region0: #{deform_block_forward.11}
  #allocation0 [shape = 'u32[]', space=smem, size = 0x4, offset = 0x4, fixed_abs, tag = 'smem constant byte address 0x4 - core index']
  #allocation1 [shape = 'u32[144,128]{1,0:T(1,128)}', space=vmem, size = 0x12000, scoped, tag = 'internal scratch']
  %s0 = inlined_call_operand.vmem [shape: bf16[128,144], index: 0, kind: input, shape index: {}]
  %s1 = inlined_call_operand.vmem [shape: bf16[144,16], index: 1, kind: input, shape index: {}]
  %s2 = inlined_call_operand.vmem [shape: f32[1,16], index: 2, kind: input, shape index: {}]
  %s3 = inlined_call_operand.vmem [shape: f32[1,16], index: 3, kind: input, shape index: {}]
  %s4 = inlined_call_operand.vmem [shape: f32[128,16], index: 4, kind: input, shape index: {}]
  %s5 = inlined_call_operand.hbm [shape: f32[128,16], index: 5, kind: output, shape index: {}]
  %s6 = sld [smem:[#allocation0]]
  $region30: #{deform_block_forward.11} parent=0
    _
  %s8 = ssub.s32 1, %s6
  %s9 = scalar_select 0, %s8, %s6
  $region1: #{deform_block_forward.11} parent=0
    #allocation2 [shape = 'u8[65536]{0}', space=vmem, size = 0x10000, scoped, tag = 'output window, operand 0, single buffered']
    #allocation3 [shape = 's32[1]{0}', space=sflag, size = 0x4, scoped, tag = 'scoped memory for deform_block_forward.11']
    %10 = vsyncpa [#allocation3], 0
    // Predicated region
    $region2: #{deform_block_forward.11} parent=1 // pred_check
      _
    $region3: #{deform_block_forward.11} parent=1 // pred_check_branch
      %12 = sbr.rel (0) target = $region5
    $region4: #{deform_block_forward.11} parent=1 // pred_region
      _
    $region5: #{deform_block_forward.11} parent=1 // pred_fallthru
      _
    // Predicated region
    $region6: #{deform_block_forward.11} parent=1 // pred_check
      _
    $region7: #{deform_block_forward.11} parent=1 // pred_check_branch
      %14 = sbr.rel (0) target = $region9
    $region8: #{deform_block_forward.11} parent=1 // pred_region
      _
    $region9: #{deform_block_forward.11} parent=1 // pred_fallthru
      _
    // Predicated region
    $region10: #{deform_block_forward.11} parent=1 // pred_check
      _
    $region11: #{deform_block_forward.11} parent=1 // pred_check_branch
      %16 = sbr.rel (0) target = $region13
    $region12: #{deform_block_forward.11} parent=1 // pred_region
      _
    $region13: #{deform_block_forward.11} parent=1 // pred_fallthru
      _
    // Predicated region
    $region14: #{deform_block_forward.11} parent=1 // pred_check
      _
    $region15: #{deform_block_forward.11} parent=1 // pred_check_branch
      %18 = sbr.rel (0) target = $region17
    $region16: #{deform_block_forward.11} parent=1 // pred_region
      _
    $region17: #{deform_block_forward.11} parent=1 // pred_fallthru
      _
    // Predicated region
    $region18: #{deform_block_forward.11} parent=1 // pred_check
      _
    $region19: #{deform_block_forward.11} parent=1 // pred_check_branch
      %20 = sbr.rel (0) target = $region21
    $region20: #{deform_block_forward.11} parent=1 // pred_region
      _
    $region21: #{deform_block_forward.11} parent=1 // pred_fallthru
      _
    %v22 = vld [vmem:[%s0] sm:$0xff]
    %v23 = vld [vmem:[%s0 + $0x8] sm:$0xff]
    %v24 = vld [vmem:[%s0 + $0x10] sm:$0xff]
    %v25 = vld [vmem:[%s0 + $0x18] sm:$0xff]
    %v26 = vld [vmem:[%s0 + $0x20] sm:$0xff]
    %v27 = vld [vmem:[%s0 + $0x28] sm:$0xff]
    %v28 = vld [vmem:[%s0 + $0x30] sm:$0xff]
    %v29 = vld [vmem:[%s0 + $0x38] sm:$0xff]
    %v30 = vld [vmem:[%s0 + $0x40] sm:$0xff]
    %v31 = vld [vmem:[%s0 + $0x48] sm:$0xff]
    %v32 = vld [vmem:[%s0 + $0x50] sm:$0xff]
    %v33 = vld [vmem:[%s0 + $0x58] sm:$0xff]
    %v34 = vld [vmem:[%s0 + $0x60] sm:$0xff]
    %v35 = vld [vmem:[%s0 + $0x68] sm:$0xff]
    %v36 = vld [vmem:[%s0 + $0x70] sm:$0xff]
    %v37 = vld [vmem:[%s0 + $0x78] sm:$0xff]
    %v38 = vld [vmem:[%s1] sm:$0xf]
    %v39 = vld [vmem:[%s1 + $0x4] sm:$0xf]
    %v40 = vld [vmem:[%s1 + $0x8] sm:$0xf]
    %v41 = vld [vmem:[%s1 + $0xc] sm:$0xf]
    %v42 = vld [vmem:[%s1 + $0x10] sm:$0xf]
    %v43 = vld [vmem:[%s1 + $0x14] sm:$0xf]
    %v44 = vld [vmem:[%s1 + $0x18] sm:$0xf]
    %v45 = vld [vmem:[%s1 + $0x1c] sm:$0xf]
    %v46 = vld [vmem:[%s1 + $0x20] sm:$0xf]
    %v47 = vld [vmem:[%s1 + $0x24] sm:$0xf]
    %v48 = vld [vmem:[%s1 + $0x28] sm:$0xf]
    %v49 = vld [vmem:[%s1 + $0x2c] sm:$0xf]
    %v50 = vld [vmem:[%s1 + $0x30] sm:$0xf]
    %v51 = vld [vmem:[%s1 + $0x34] sm:$0xf]
    %v52 = vld [vmem:[%s1 + $0x38] sm:$0xf]
    %v53 = vld [vmem:[%s1 + $0x3c] sm:$0xf]
    %v54 = vld [vmem:[%s1 + $0x40] sm:$0xf]
    %v55 = vld [vmem:[%s1 + $0x44] sm:$0xf]
    %v72 = vunpack.c.l.b16 %v22
    %v73 = vunpack.c.h.b16 %v22
    %v74 = vunpack.c.l.b16 %v23
    %v75 = vunpack.c.h.b16 %v23
    %v76 = vunpack.c.l.b16 %v24
    %v77 = vunpack.c.h.b16 %v24
    %v78 = vunpack.c.l.b16 %v25
    %v79 = vunpack.c.h.b16 %v25
    %v80 = vunpack.c.l.b16 %v26
    %v81 = vunpack.c.h.b16 %v26
    %v82 = vunpack.c.l.b16 %v27
    %v83 = vunpack.c.h.b16 %v27
    %v84 = vunpack.c.l.b16 %v28
    %v85 = vunpack.c.h.b16 %v28
    %v86 = vunpack.c.l.b16 %v29
    %v87 = vunpack.c.h.b16 %v29
    %v88 = vunpack.c.l.b16 %v30
    %v89 = vunpack.c.h.b16 %v30
    %v90 = vunpack.c.l.b16 %v31
    %v91 = vunpack.c.h.b16 %v31
    %v92 = vunpack.c.l.b16 %v32
    %v93 = vunpack.c.h.b16 %v32
    %v94 = vunpack.c.l.b16 %v33
    %v95 = vunpack.c.h.b16 %v33
    %v96 = vunpack.c.l.b16 %v34
    %v97 = vunpack.c.h.b16 %v34
    %v98 = vunpack.c.l.b16 %v35
    %v99 = vunpack.c.h.b16 %v35
    %v100 = vunpack.c.l.b16 %v36
    %v101 = vunpack.c.h.b16 %v36
    %v102 = vunpack.c.l.b16 %v37
    %v103 = vunpack.c.h.b16 %v37
    %v104 = vpack.c.b16 %v74, %v72
    %v105 = vpack.c.b16 %v75, %v73
    %v106 = vpack.c.b16 %v78, %v76
    %v107 = vpack.c.b16 %v79, %v77
    %v108 = vpack.c.b16 %v82, %v80
    %v109 = vpack.c.b16 %v83, %v81
    %v110 = vpack.c.b16 %v86, %v84
    %v111 = vpack.c.b16 %v87, %v85
    %v112 = vpack.c.b16 %v90, %v88
    %v113 = vpack.c.b16 %v91, %v89
    %v114 = vpack.c.b16 %v94, %v92
    %v115 = vpack.c.b16 %v95, %v93
    %v116 = vpack.c.b16 %v98, %v96
    %v117 = vpack.c.b16 %v99, %v97
    %v118 = vpack.c.b16 %v102, %v100
    %v119 = vpack.c.b16 %v103, %v101
    %v146 = vunpack.c.l.b16 %v38
    %v147 = vunpack.c.l.b16 %v39
    %v148 = vunpack.c.l.b16 %v40
    %v149 = vunpack.c.l.b16 %v41
    %v150 = vunpack.c.l.b16 %v42
    %v151 = vunpack.c.l.b16 %v43
    %v152 = vunpack.c.l.b16 %v44
    %v153 = vunpack.c.l.b16 %v45
    %v154 = vunpack.c.l.b16 %v46
    %v155 = vunpack.c.l.b16 %v47
    %v156 = vunpack.c.l.b16 %v48
    %v157 = vunpack.c.l.b16 %v49
    %v158 = vunpack.c.l.b16 %v50
    %v159 = vunpack.c.l.b16 %v51
    %v160 = vunpack.c.l.b16 %v52
    %v161 = vunpack.c.l.b16 %v53
    %v162 = vunpack.c.l.b16 %v54
    %v163 = vunpack.c.l.b16 %v55
    %v164 = vpack.c.b16 %v147, %v146
    %v165 = vpack.c.b16 %v149, %v148
    %v166 = vpack.c.b16 %v151, %v150
    %v167 = vpack.c.b16 %v153, %v152
    %v168 = vpack.c.b16 %v155, %v154
    %v169 = vpack.c.b16 %v157, %v156
    %v170 = vpack.c.b16 %v159, %v158
    %v171 = vpack.c.b16 %v161, %v160
    %v172 = vpack.c.b16 %v163, %v162
    %vm182 = vcmask 130048
    %v184 = vsel %vm182, %v105, 0
    %v187 = vsel %vm182, %v107, 0
    %v190 = vsel %vm182, %v109, 0
    %v193 = vsel %vm182, %v111, 0
    %v196 = vsel %vm182, %v113, 0
    %v199 = vsel %vm182, %v115, 0
    %v202 = vsel %vm182, %v117, 0
    %v205 = vsel %vm182, %v119, 0
    %207 = vmatprep.subr.bf16.mxu0 0
    %208 = vmatpush1.bf16.msra.mxu0 %v171
    %209 = vmatprep.subr.bf16.mxu0 0
    %210 = vmatpush1.bf16.msra.mxu0 %v170
    %211 = vmatprep.subr.bf16.mxu0 0
    %212 = vmatpush1.bf16.msra.mxu0 %v169
    %213 = vmatprep.subr.bf16.mxu0 0
    %214 = vmatpush1.bf16.msra.mxu0 %v168
    %215 = vmatprep.subr.bf16.mxu0 0
    %216 = vmatpush1.bf16.msra.mxu0 %v167
    %217 = vmatprep.subr.bf16.mxu0 0
    %218 = vmatpush1.bf16.msra.mxu0 %v166
    %219 = vmatprep.subr.bf16.mxu0 0
    %220 = vmatpush1.bf16.msra.mxu0 %v165
    %221 = vmatprep.subr.bf16.mxu0 0
    %222 = vmatpush1.bf16.msra.mxu0 %v164
    %223 = vmatprep.subr.bf16.mxu0 0
    %224 = vmatpush2.bf16.msra.mxu0 0
    %225 = vmatprep.subr.bf16.mxu0 0
    %226 = vmatpush2.bf16.msra.mxu0 0
    %227 = vmatprep.subr.bf16.mxu0 0
    %228 = vmatpush2.bf16.msra.mxu0 0
    %229 = vmatprep.subr.bf16.mxu0 0
    %230 = vmatpush2.bf16.msra.mxu0 0
    %231 = vmatprep.subr.bf16.mxu0 0
    %232 = vmatpush2.bf16.msra.mxu0 0
    %233 = vmatprep.subr.bf16.mxu0 0
    %234 = vmatpush2.bf16.msra.mxu0 0
    %235 = vmatprep.subr.bf16.mxu0 0
    %236 = vmatpush2.bf16.msra.mxu0 0
    %237 = vmatprep.subr.bf16.mxu0 0
    %238 = vmatpush2.bf16.msra.mxu0 %v172
    %239 = vmatprep.mubr.bf16.mxu0 %v184
    %240 = vmatmul.mubr.bf16.gmra.mxu0 %v104
    %v241 = vpop.f32.mrf.mxu0
    %v242 = vadd.f32 0.0, %v241
    %v243 = vpop.f32.mrf.mxu0
    %v244 = vpop.f32.mrf.mxu0
    %v245 = vadd.f32 0.0, %v244
    %v246 = vpop.f32.mrf.mxu0
    %247 = vmatprep.mubr.bf16.mxu0 %v187
    %248 = vmatmul.mubr.bf16.gmra.mxu0 %v106
    %v249 = vpop.f32.mrf.mxu0
    %v250 = vadd.f32 0.0, %v249
    %v251 = vpop.f32.mrf.mxu0
    %v252 = vpop.f32.mrf.mxu0
    %v253 = vadd.f32 0.0, %v252
    %v254 = vpop.f32.mrf.mxu0
    %255 = vmatprep.mubr.bf16.mxu0 %v190
    %256 = vmatmul.mubr.bf16.gmra.mxu0 %v108
    %v257 = vpop.f32.mrf.mxu0
    %v258 = vadd.f32 0.0, %v257
    %v259 = vpop.f32.mrf.mxu0
    %v260 = vpop.f32.mrf.mxu0
    %v261 = vadd.f32 0.0, %v260
    %v262 = vpop.f32.mrf.mxu0
    %263 = vmatprep.mubr.bf16.mxu0 %v193
    %264 = vmatmul.mubr.bf16.gmra.mxu0 %v110
    %v265 = vpop.f32.mrf.mxu0
    %v266 = vadd.f32 0.0, %v265
    %v267 = vpop.f32.mrf.mxu0
    %v268 = vpop.f32.mrf.mxu0
    %v269 = vadd.f32 0.0, %v268
    %v270 = vpop.f32.mrf.mxu0
    %271 = vmatprep.mubr.bf16.mxu0 %v196
    %272 = vmatmul.mubr.bf16.gmra.mxu0 %v112
    %v273 = vpop.f32.mrf.mxu0
    %v274 = vadd.f32 0.0, %v273
    %v275 = vpop.f32.mrf.mxu0
    %v276 = vpop.f32.mrf.mxu0
    %v277 = vadd.f32 0.0, %v276
    %v278 = vpop.f32.mrf.mxu0
    %279 = vmatprep.mubr.bf16.mxu0 %v199
    %280 = vmatmul.mubr.bf16.gmra.mxu0 %v114
    %v281 = vpop.f32.mrf.mxu0
    %v282 = vadd.f32 0.0, %v281
    %v283 = vpop.f32.mrf.mxu0
    %v284 = vpop.f32.mrf.mxu0
    %v285 = vadd.f32 0.0, %v284
    %v286 = vpop.f32.mrf.mxu0
    %287 = vmatprep.mubr.bf16.mxu0 %v202
    %288 = vmatmul.mubr.bf16.gmra.mxu0 %v116
    %v289 = vpop.f32.mrf.mxu0
    %v290 = vadd.f32 0.0, %v289
    %v291 = vpop.f32.mrf.mxu0
    %v292 = vpop.f32.mrf.mxu0
    %v293 = vadd.f32 0.0, %v292
    %v294 = vpop.f32.mrf.mxu0
    %295 = vmatprep.mubr.bf16.mxu0 %v205
    %296 = vmatmul.mubr.bf16.gmra.mxu0 %v118
    %v297 = vpop.f32.mrf.mxu0
    %v298 = vadd.f32 0.0, %v297
    %v299 = vpop.f32.mrf.mxu0
    %v300 = vpop.f32.mrf.mxu0
    %v301 = vadd.f32 0.0, %v300
    %v302 = vpop.f32.mrf.mxu0
    %303 = vdwg.mxu0
    %v304 = vld [vmem:[%s2] sm:$0x1]
    %v306 = vlaneseq
    %v307 = vshrl.u32 %v306, 7
    %v308 = vsub.s32 0, %v307
    %v309 = vrot.slane %v304, %v308
    %v311 = vmul.f32 %v242, %v309
    %v312 = vmul.f32 %v245, %v309
    %v313 = vmul.f32 %v250, %v309
    %v314 = vmul.f32 %v253, %v309
    %v315 = vmul.f32 %v258, %v309
    %v316 = vmul.f32 %v261, %v309
    %v317 = vmul.f32 %v266, %v309
    %v318 = vmul.f32 %v269, %v309
    %v319 = vmul.f32 %v274, %v309
    %v320 = vmul.f32 %v277, %v309
    %v321 = vmul.f32 %v282, %v309
    %v322 = vmul.f32 %v285, %v309
    %v323 = vmul.f32 %v290, %v309
    %v324 = vmul.f32 %v293, %v309
    %v325 = vmul.f32 %v298, %v309
    %v326 = vmul.f32 %v301, %v309
    %v327 = vld [vmem:[%s3] sm:$0x1]
    %v329 = vlaneseq
    %v330 = vshrl.u32 %v329, 7
    %v331 = vsub.s32 0, %v330
    %v332 = vrot.slane %v327, %v331
    %v334 = vadd.f32 %v311, %v332
    %v335 = vadd.f32 %v312, %v332
    %v336 = vadd.f32 %v313, %v332
    %v337 = vadd.f32 %v314, %v332
    %v338 = vadd.f32 %v315, %v332
    %v339 = vadd.f32 %v316, %v332
    %v340 = vadd.f32 %v317, %v332
    %v341 = vadd.f32 %v318, %v332
    %v342 = vadd.f32 %v319, %v332
    %v343 = vadd.f32 %v320, %v332
    %v344 = vadd.f32 %v321, %v332
    %v345 = vadd.f32 %v322, %v332
    %v346 = vadd.f32 %v323, %v332
    %v347 = vadd.f32 %v324, %v332
    %v348 = vadd.f32 %v325, %v332
    %v349 = vadd.f32 %v326, %v332
    %v350 = vld [vmem:[%s4] sm:$0xff]
    %v351 = vld [vmem:[%s4 + $0x8] sm:$0xff]
    %v352 = vld [vmem:[%s4 + $0x10] sm:$0xff]
    %v353 = vld [vmem:[%s4 + $0x18] sm:$0xff]
    %v354 = vld [vmem:[%s4 + $0x20] sm:$0xff]
    %v355 = vld [vmem:[%s4 + $0x28] sm:$0xff]
    %v356 = vld [vmem:[%s4 + $0x30] sm:$0xff]
    %v357 = vld [vmem:[%s4 + $0x38] sm:$0xff]
    %v358 = vld [vmem:[%s4 + $0x40] sm:$0xff]
    %v359 = vld [vmem:[%s4 + $0x48] sm:$0xff]
    %v360 = vld [vmem:[%s4 + $0x50] sm:$0xff]
    %v361 = vld [vmem:[%s4 + $0x58] sm:$0xff]
    %v362 = vld [vmem:[%s4 + $0x60] sm:$0xff]
    %v363 = vld [vmem:[%s4 + $0x68] sm:$0xff]
    %v364 = vld [vmem:[%s4 + $0x70] sm:$0xff]
    %v365 = vld [vmem:[%s4 + $0x78] sm:$0xff]
    %v366 = vadd.f32 %v334, %v350
    %v367 = vadd.f32 %v335, %v351
    %v368 = vadd.f32 %v336, %v352
    %v369 = vadd.f32 %v337, %v353
    %v370 = vadd.f32 %v338, %v354
    %v371 = vadd.f32 %v339, %v355
    %v372 = vadd.f32 %v340, %v356
    %v373 = vadd.f32 %v341, %v357
    %v374 = vadd.f32 %v342, %v358
    %v375 = vadd.f32 %v343, %v359
    %v376 = vadd.f32 %v344, %v360
    %v377 = vadd.f32 %v345, %v361
    %v378 = vadd.f32 %v346, %v362
    %v379 = vadd.f32 %v347, %v363
    %v380 = vadd.f32 %v348, %v364
    %v381 = vadd.f32 %v349, %v365
    %v382 = vmax.f32 %v366, 0.0
    %v383 = vmax.f32 %v367, 0.0
    %v384 = vmax.f32 %v368, 0.0
    %v385 = vmax.f32 %v369, 0.0
    %v386 = vmax.f32 %v370, 0.0
    %v387 = vmax.f32 %v371, 0.0
    %v388 = vmax.f32 %v372, 0.0
    %v389 = vmax.f32 %v373, 0.0
    %v390 = vmax.f32 %v374, 0.0
    %v391 = vmax.f32 %v375, 0.0
    %v392 = vmax.f32 %v376, 0.0
    %v393 = vmax.f32 %v377, 0.0
    %v394 = vmax.f32 %v378, 0.0
    %v395 = vmax.f32 %v379, 0.0
    %v396 = vmax.f32 %v380, 0.0
    %v397 = vmax.f32 %v381, 0.0
    %398 = vst.msk [vmem:[#allocation2] sm:$0xff] %vm182, %v382
    %399 = vst.msk [vmem:[#allocation2 + $0x8] sm:$0xff] %vm182, %v383
    %400 = vst.msk [vmem:[#allocation2 + $0x10] sm:$0xff] %vm182, %v384
    %401 = vst.msk [vmem:[#allocation2 + $0x18] sm:$0xff] %vm182, %v385
    %402 = vst.msk [vmem:[#allocation2 + $0x20] sm:$0xff] %vm182, %v386
    %403 = vst.msk [vmem:[#allocation2 + $0x28] sm:$0xff] %vm182, %v387
    %404 = vst.msk [vmem:[#allocation2 + $0x30] sm:$0xff] %vm182, %v388
    %405 = vst.msk [vmem:[#allocation2 + $0x38] sm:$0xff] %vm182, %v389
    %406 = vst.msk [vmem:[#allocation2 + $0x40] sm:$0xff] %vm182, %v390
    %407 = vst.msk [vmem:[#allocation2 + $0x48] sm:$0xff] %vm182, %v391
    %408 = vst.msk [vmem:[#allocation2 + $0x50] sm:$0xff] %vm182, %v392
    %409 = vst.msk [vmem:[#allocation2 + $0x58] sm:$0xff] %vm182, %v393
    %410 = vst.msk [vmem:[#allocation2 + $0x60] sm:$0xff] %vm182, %v394
    %411 = vst.msk [vmem:[#allocation2 + $0x68] sm:$0xff] %vm182, %v395
    %412 = vst.msk [vmem:[#allocation2 + $0x70] sm:$0xff] %vm182, %v396
    %413 = vst.msk [vmem:[#allocation2 + $0x78] sm:$0xff] %vm182, %v397
    // Predicated region
    $region22: #{deform_block_forward.11} parent=1 // pred_check
      _
    $region23: #{deform_block_forward.11} parent=1 // pred_check_branch
      %415 = sbr.rel (0) target = $region25
    $region24: #{deform_block_forward.11} parent=1 // pred_region
      %s417 = ssub.s32 2048, 2048
      %418 = vsyncadd [#allocation3], %s417
      %s419 = sshll.u32 [#allocation2], 4
      %s420 = int_to_ptr.vmem [resolvable:$true] %s419
      %425 = dma.vmem_to_hbm [thread:$0]  %s420, 2048, %s5, [#allocation3], 128, 128, 8
    $region25: #{deform_block_forward.11} parent=1 // pred_fallthru
      _
    // Predicated region
    $region26: #{deform_block_forward.11} parent=1 // pred_check
      _
    $region27: #{deform_block_forward.11} parent=1 // pred_check_branch
      %427 = sbr.rel (0) target = $region29
    $region28: #{deform_block_forward.11} parent=1 // pred_region
      %428 = dma.done [#allocation3], 2048
    $region29: #{deform_block_forward.11} parent=1 // pred_fallthru
      _
    %429 = vsyncpa [#allocation3], 1

</llo_original>
